<compile_context>
chip_gen: v5e
topology: v5e:2x2
jax: 0.10.0
libtpu: 0.0.40
codegen_flags: <defaults>
</compile_context>

<pallas_src>
import functools
import jax
import jax.numpy as jnp
from jax.experimental import pallas as pl
from jax.experimental.pallas import tpu as pltpu


# ----------------------------------------------------------------------------
# Fused per-batch kernel: `depth` applications of one shared pre-norm layer
# ----------------------------------------------------------------------------
def _make_block_kernel(L, D, H, Dh, FF, depth, eps=1e-5):
    inv_sqrt2 = 0.7071067811865476

    def _layernorm(x, w, b):
        mu = jnp.mean(x, axis=-1, keepdims=True)
        var = jnp.mean((x - mu) ** 2, axis=-1, keepdims=True)
        return (x - mu) * jax.lax.rsqrt(var + eps) * w + b

    def kernel(x_ref, ln1w_ref, ln1b_ref, wqkv_ref, bqkv_ref,
               wo_ref, bo_ref, ln2w_ref, ln2b_ref,
               w1_ref, b1_ref, w2_ref, b2_ref, o_ref):
        x = x_ref[...].astype(jnp.float32)                      # (L, D)

        # tiny per-row vectors: cheap to hoist; matmul weights read at use
        ln1w = ln1w_ref[...]; ln1b = ln1b_ref[...]
        ln2w = ln2w_ref[...]; ln2b = ln2b_ref[...]

        # ---- `depth` applications of the SAME (shared-parameter) layer -----
        for _ in range(depth):
            # pre-norm multi-head self-attention + residual
            h = _layernorm(x, ln1w, ln1b)                       # (L, D)
            # one packed QKV projection: (L, D) @ (D, 3D) -> (L, 3D)
            qkv = jnp.dot(h, wqkv_ref[...],
                          preferred_element_type=jnp.float32) + bqkv_ref[...]
            hv_heads = []
            for hd in range(H):                                 # static unroll
                qh = qkv[:, hd * Dh:(hd + 1) * Dh]              # (L, Dh)
                kh = qkv[:, D + hd * Dh:D + (hd + 1) * Dh]
                vh = qkv[:, 2 * D + hd * Dh:2 * D + (hd + 1) * Dh]
                # scores = qh @ kh^T  (1/sqrt(Dh) already folded into Q cols)
                s = jax.lax.dot_general(
                    qh, kh, (((1,), (1,)), ((), ())),
                    preferred_element_type=jnp.float32)         # (L, L)
                s = s - jnp.max(s, axis=-1, keepdims=True)
                p = jnp.exp(s)
                inv = pl.reciprocal(jnp.sum(p, axis=-1, keepdims=True),
                                    approx=False)
                p = p * inv
                hv_heads.append(jnp.dot(p, vh,
                                        preferred_element_type=jnp.float32))
            hv = jnp.concatenate(hv_heads, axis=-1)             # (L, D)
            # merged output projection: one (L, D) @ (D, D) matmul
            x = x + jnp.dot(hv, wo_ref[...],
                            preferred_element_type=jnp.float32) + bo_ref[...]

            # pre-norm MLP (exact erf-GELU) + residual
            h2 = _layernorm(x, ln2w, ln2b)
            f = jnp.dot(h2, w1_ref[...],
                        preferred_element_type=jnp.float32) + b1_ref[...]
            f = 0.5 * f * (1.0 + jax.lax.erf(f * inv_sqrt2))
            x = x + jnp.dot(f, w2_ref[...],
                            preferred_element_type=jnp.float32) + b2_ref[...]

        o_ref[...] = x.astype(o_ref.dtype)

    return kernel


# ----------------------------------------------------------------------------
# Wrapper: one pallas_call, grid over batch, whole TinyViTBlock (all depths)
# ----------------------------------------------------------------------------
def tiny_vit_block(x, p, *, num_heads, depth=2):
    B, L, D = x.shape
    H = num_heads
    Dh = D // H
    FF = p["w1"].shape[1]
    scale = 1.0 / float(Dh) ** 0.5

    # keep the packed (D, 3D) QKV weight; fold 1/sqrt(Dh) into the Q columns
    col_scale = jnp.concatenate([jnp.full((D,), scale, jnp.float32),
                                 jnp.ones((2 * D,), jnp.float32)])
    wqkv = p["wqkv"] * col_scale
    bqkv = p["bqkv"] * col_scale

    xf = x.reshape(B * L, D)    # per-batch (L, D) tiles along the sublane dim

    kernel = _make_block_kernel(L, D, H, Dh, FF, depth)

    def wspec(shape):           # weights: constant index_map -> VMEM-resident
        return pl.BlockSpec(shape, lambda b, s=shape: (0,) * len(s))

    out = pl.pallas_call(
        kernel,
        out_shape=jax.ShapeDtypeStruct((B * L, D), x.dtype),
        grid=(B,),
        in_specs=[
            pl.BlockSpec((L, D), lambda b: (b, 0)),         # x  (per-batch)
            wspec((1, D)), wspec((1, D)),                   # ln1 w, b
            wspec((D, 3 * D)), wspec((1, 3 * D)),           # packed qkv w, b
            wspec((D, D)), wspec((1, D)),                   # out-proj w, b
            wspec((1, D)), wspec((1, D)),                   # ln2 w, b
            wspec((D, FF)), wspec((1, FF)),                 # mlp linear1 w, b
            wspec((FF, D)), wspec((1, D)),                  # mlp linear2 w, b
        ],
        out_specs=pl.BlockSpec((L, D), lambda b: (b, 0)),
        compiler_params=pltpu.CompilerParams(
            dimension_semantics=("parallel",),
            vmem_limit_bytes=32 * 1024 * 1024),
    )(xf, p["ln1_w"], p["ln1_b"], wqkv, bqkv, p["wo"], p["bo"],
      p["ln2_w"], p["ln2_b"], p["w1"], p["b1"], p["w2"], p["b2"])

    return out.reshape(B, L, D)


# ----------------------------------------------------------------------------
# Pure-JAX reference (matches the PyTorch TransformerEncoderLayer forward)
# ----------------------------------------------------------------------------
def _ref_layer(x, p, num_heads, eps=1e-5):
    D = x.shape[-1]
    H = num_heads
    Dh = D // H

    def ln(y, w, b):
        mu = y.mean(-1, keepdims=True)
        var = ((y - mu) ** 2).mean(-1, keepdims=True)
        return (y - mu) / jnp.sqrt(var + eps) * w + b

    h = ln(x, p["ln1_w"], p["ln1_b"])
    qkv = h @ p["wqkv"] + p["bqkv"]
    q, k, v = jnp.split(qkv, 3, axis=-1)
    B, L, _ = x.shape
    q = q.reshape(B, L, H, Dh).transpose(0, 2, 1, 3)
    k = k.reshape(B, L, H, Dh).transpose(0, 2, 1, 3)
    v = v.reshape(B, L, H, Dh).transpose(0, 2, 1, 3)
    s = jnp.einsum("bhqd,bhkd->bhqk", q, k) / jnp.sqrt(Dh).astype(x.dtype)
    pattn = jax.nn.softmax(s, axis=-1)
    o = jnp.einsum("bhqk,bhkd->bhqd", pattn, v)
    o = o.transpose(0, 2, 1, 3).reshape(B, L, D)
    x = x + (o @ p["wo"] + p["bo"])
    h2 = ln(x, p["ln2_w"], p["ln2_b"])
    f = h2 @ p["w1"] + p["b1"]
    f = 0.5 * f * (1.0 + jax.lax.erf(f / jnp.sqrt(2.0)))
    return x + (f @ p["w2"] + p["b2"])


def _ref_block(x, p, num_heads, depth=2):
    for _ in range(depth):        # shared parameters, applied depth times
        x = _ref_layer(x, p, num_heads)
    return x


# ----------------------------------------------------------------------------
# Deterministic parameter init (shapes match nn.TransformerEncoderLayer)
# ----------------------------------------------------------------------------
def init_params(key, dim, mlp_ratio):
    ff = int(dim * mlp_ratio)
    ks = jax.random.split(key, 4)
    std = 0.02
    return {
        "ln1_w": jnp.ones((1, dim), jnp.float32),
        "ln1_b": jnp.zeros((1, dim), jnp.float32),
        "wqkv": std * jax.random.normal(ks[0], (dim, 3 * dim), jnp.float32),
        "bqkv": jnp.zeros((1, 3 * dim), jnp.float32),
        "wo": std * jax.random.normal(ks[1], (dim, dim), jnp.float32),
        "bo": jnp.zeros((1, dim), jnp.float32),
        "ln2_w": jnp.ones((1, dim), jnp.float32),
        "ln2_b": jnp.zeros((1, dim), jnp.float32),
        "w1": std * jax.random.normal(ks[2], (dim, ff), jnp.float32),
        "b1": jnp.zeros((1, ff), jnp.float32),
        "w2": std * jax.random.normal(ks[3], (ff, dim), jnp.float32),
        "b2": jnp.zeros((1, dim), jnp.float32),
    }


if __name__ == "__main__":
    B, L, dim = 2, 8, 32          # small token sequence, d_model = 32
    num_heads, mlp_ratio, depth = 4, 4.0, 2

    root = jax.random.PRNGKey(0)
    kx, kp = jax.random.split(root)
    x = jax.random.normal(kx, (B, L, dim), jnp.float32)
    params = init_params(kp, dim, mlp_ratio)

    fwd = jax.jit(functools.partial(tiny_vit_block,
                                    num_heads=num_heads, depth=depth))
    out = jax.block_until_ready(fwd(x, params))

    ref = _ref_block(x, params, num_heads=num_heads, depth=depth)
    assert out.shape == (B, L, dim)
    assert jnp.allclose(out, ref, rtol=1e-4, atol=1e-4), "mismatch vs reference"

    print("KERNEL_OK")
</pallas_src>

<mosaic_0001>
module attributes {stable_mosaic.version = 11 : i64} {
  func.func @kernel(%arg0: i32, %arg1: memref<8x32xf32, #tpu.memory_space<vmem>>, %arg2: memref<1x32xf32, #tpu.memory_space<vmem>>, %arg3: memref<1x32xf32, #tpu.memory_space<vmem>>, %arg4: memref<32x96xf32, #tpu.memory_space<vmem>>, %arg5: memref<1x96xf32, #tpu.memory_space<vmem>>, %arg6: memref<32x32xf32, #tpu.memory_space<vmem>>, %arg7: memref<1x32xf32, #tpu.memory_space<vmem>>, %arg8: memref<1x32xf32, #tpu.memory_space<vmem>>, %arg9: memref<1x32xf32, #tpu.memory_space<vmem>>, %arg10: memref<32x128xf32, #tpu.memory_space<vmem>>, %arg11: memref<1x128xf32, #tpu.memory_space<vmem>>, %arg12: memref<128x32xf32, #tpu.memory_space<vmem>>, %arg13: memref<1x32xf32, #tpu.memory_space<vmem>>, %arg14: memref<8x32xf32, #tpu.memory_space<vmem>>) attributes {dimension_semantics = [#tpu.dimension_semantics<parallel>], iteration_bounds = array<i64: 2>, scalar_prefetch = 0 : i64, scratch_operands = 0 : i64, tpu.core_type = #tpu.core_type<tc>, window_params = [{transform_indices = @transform_0, window_bounds = array<i64: 8, 32>}, {pipeline_mode = #tpu.pipeline_mode<synchronous>, transform_indices = @transform_1, window_bounds = array<i64: 1, 32>}, {pipeline_mode = #tpu.pipeline_mode<synchronous>, transform_indices = @transform_2, window_bounds = array<i64: 1, 32>}, {pipeline_mode = #tpu.pipeline_mode<synchronous>, transform_indices = @transform_3, window_bounds = array<i64: 32, 96>}, {pipeline_mode = #tpu.pipeline_mode<synchronous>, transform_indices = @transform_4, window_bounds = array<i64: 1, 96>}, {pipeline_mode = #tpu.pipeline_mode<synchronous>, transform_indices = @transform_5, window_bounds = array<i64: 32, 32>}, {pipeline_mode = #tpu.pipeline_mode<synchronous>, transform_indices = @transform_6, window_bounds = array<i64: 1, 32>}, {pipeline_mode = #tpu.pipeline_mode<synchronous>, transform_indices = @transform_7, window_bounds = array<i64: 1, 32>}, {pipeline_mode = #tpu.pipeline_mode<synchronous>, transform_indices = @transform_8, window_bounds = array<i64: 1, 32>}, {pipeline_mode = #tpu.pipeline_mode<synchronous>, transform_indices = @transform_9, window_bounds = array<i64: 32, 128>}, {pipeline_mode = #tpu.pipeline_mode<synchronous>, transform_indices = @transform_10, window_bounds = array<i64: 1, 128>}, {pipeline_mode = #tpu.pipeline_mode<synchronous>, transform_indices = @transform_11, window_bounds = array<i64: 128, 32>}, {pipeline_mode = #tpu.pipeline_mode<synchronous>, transform_indices = @transform_12, window_bounds = array<i64: 1, 32>}, {transform_indices = @transform_13, window_bounds = array<i64: 8, 32>}]} {
    %c0 = arith.constant 0 : index
    %c0_0 = arith.constant 0 : index
    %0 = vector.load %arg1[%c0, %c0_0] : memref<8x32xf32, #tpu.memory_space<vmem>>, vector<8x32xf32>
    %c0_1 = arith.constant 0 : index
    %c0_2 = arith.constant 0 : index
    %1 = vector.load %arg2[%c0_1, %c0_2] : memref<1x32xf32, #tpu.memory_space<vmem>>, vector<1x32xf32>
    %c0_3 = arith.constant 0 : index
    %c0_4 = arith.constant 0 : index
    %2 = vector.load %arg3[%c0_3, %c0_4] : memref<1x32xf32, #tpu.memory_space<vmem>>, vector<1x32xf32>
    %c0_5 = arith.constant 0 : index
    %c0_6 = arith.constant 0 : index
    %3 = vector.load %arg8[%c0_5, %c0_6] : memref<1x32xf32, #tpu.memory_space<vmem>>, vector<1x32xf32>
    %c0_7 = arith.constant 0 : index
    %c0_8 = arith.constant 0 : index
    %4 = vector.load %arg9[%c0_7, %c0_8] : memref<1x32xf32, #tpu.memory_space<vmem>>, vector<1x32xf32>
    %cst = arith.constant dense<0.000000e+00> : vector<8xf32>
    %5 = vector.multi_reduction <add>, %0, %cst [1] : vector<8x32xf32> to vector<8xf32>
    %6 = vector.shape_cast %5 : vector<8xf32> to vector<8x1xf32>
    %cst_9 = arith.constant 3.200000e+01 : f32
    %7 = vector.broadcast %cst_9 : f32 to vector<8x1xf32>
    %8 = arith.divf %6, %7 : vector<8x1xf32>
    %9 = vector.broadcast %8 : vector<8x1xf32> to vector<8x32xf32>
    %10 = arith.subf %0, %9 : vector<8x32xf32>
    %11 = arith.mulf %10, %10 : vector<8x32xf32>
    %cst_10 = arith.constant dense<0.000000e+00> : vector<8xf32>
    %12 = vector.multi_reduction <add>, %11, %cst_10 [1] : vector<8x32xf32> to vector<8xf32>
    %13 = vector.shape_cast %12 : vector<8xf32> to vector<8x1xf32>
    %cst_11 = arith.constant 3.200000e+01 : f32
    %14 = vector.broadcast %cst_11 : f32 to vector<8x1xf32>
    %15 = arith.divf %13, %14 : vector<8x1xf32>
    %16 = vector.broadcast %8 : vector<8x1xf32> to vector<8x32xf32>
    %17 = arith.subf %0, %16 : vector<8x32xf32>
    %cst_12 = arith.constant 9.99999974E-6 : f32
    %18 = vector.broadcast %cst_12 : f32 to vector<8x1xf32>
    %19 = arith.addf %15, %18 : vector<8x1xf32>
    %20 = math.rsqrt %19 : vector<8x1xf32>
    %21 = vector.broadcast %20 : vector<8x1xf32> to vector<8x32xf32>
    %22 = arith.mulf %17, %21 : vector<8x32xf32>
    %23 = vector.broadcast %1 : vector<1x32xf32> to vector<8x32xf32>
    %24 = arith.mulf %22, %23 : vector<8x32xf32>
    %25 = vector.broadcast %2 : vector<1x32xf32> to vector<8x32xf32>
    %26 = arith.addf %24, %25 : vector<8x32xf32>
    %c0_13 = arith.constant 0 : index
    %c0_14 = arith.constant 0 : index
    %27 = vector.load %arg4[%c0_13, %c0_14] : memref<32x96xf32, #tpu.memory_space<vmem>>, vector<32x96xf32>
    %cst_15 = arith.constant dense<0.000000e+00> : vector<8x96xf32>
    %28 = tpu.matmul %26, %27, %cst_15 {dimension_numbers = #tpu.dot_dimension_numbers<[1], [0], [0], [1], [0, 0, 1, 1], [], []>} : vector<8x32xf32>, vector<32x96xf32>, vector<8x96xf32> -> vector<8x96xf32>
    %c0_16 = arith.constant 0 : index
    %c0_17 = arith.constant 0 : index
    %29 = vector.load %arg5[%c0_16, %c0_17] : memref<1x96xf32, #tpu.memory_space<vmem>>, vector<1x96xf32>
    %30 = vector.broadcast %29 : vector<1x96xf32> to vector<8x96xf32>
    %31 = arith.addf %28, %30 : vector<8x96xf32>
    %32 = vector.extract_strided_slice %31 {offsets = [0, 0], sizes = [8, 8], strides = [1, 1]} : vector<8x96xf32> to vector<8x8xf32>
    %33 = vector.extract_strided_slice %31 {offsets = [0, 32], sizes = [8, 8], strides = [1, 1]} : vector<8x96xf32> to vector<8x8xf32>
    %34 = vector.extract_strided_slice %31 {offsets = [0, 64], sizes = [8, 8], strides = [1, 1]} : vector<8x96xf32> to vector<8x8xf32>
    %cst_18 = arith.constant dense<0.000000e+00> : vector<8x8xf32>
    %35 = tpu.matmul %32, %33, %cst_18 {dimension_numbers = #tpu.dot_dimension_numbers<[1], [1], [0], [0], [0, 0, 1, 0], [], []>} : vector<8x8xf32>, vector<8x8xf32>, vector<8x8xf32> -> vector<8x8xf32>
    %cst_19 = arith.constant dense<0xFF800000> : vector<8xf32>
    %36 = vector.multi_reduction <maximumf>, %35, %cst_19 [1] : vector<8x8xf32> to vector<8xf32>
    %37 = vector.shape_cast %36 : vector<8xf32> to vector<8x1xf32>
    %38 = vector.broadcast %37 : vector<8x1xf32> to vector<8x8xf32>
    %39 = arith.subf %35, %38 : vector<8x8xf32>
    %40 = math.exp %39 : vector<8x8xf32>
    %cst_20 = arith.constant dense<0.000000e+00> : vector<8xf32>
    %41 = vector.multi_reduction <add>, %40, %cst_20 [1] : vector<8x8xf32> to vector<8xf32>
    %42 = vector.shape_cast %41 : vector<8xf32> to vector<8x1xf32>
    %43 = tpu.reciprocal %42 : vector<8x1xf32> -> vector<8x1xf32>
    %44 = vector.broadcast %43 : vector<8x1xf32> to vector<8x8xf32>
    %45 = arith.mulf %40, %44 : vector<8x8xf32>
    %cst_21 = arith.constant dense<0.000000e+00> : vector<8x8xf32>
    %46 = tpu.matmul %45, %34, %cst_21 {dimension_numbers = #tpu.dot_dimension_numbers<[1], [0], [0], [1], [0, 0, 1, 1], [], []>} : vector<8x8xf32>, vector<8x8xf32>, vector<8x8xf32> -> vector<8x8xf32>
    %47 = vector.extract_strided_slice %31 {offsets = [0, 8], sizes = [8, 8], strides = [1, 1]} : vector<8x96xf32> to vector<8x8xf32>
    %48 = vector.extract_strided_slice %31 {offsets = [0, 40], sizes = [8, 8], strides = [1, 1]} : vector<8x96xf32> to vector<8x8xf32>
    %49 = vector.extract_strided_slice %31 {offsets = [0, 72], sizes = [8, 8], strides = [1, 1]} : vector<8x96xf32> to vector<8x8xf32>
    %cst_22 = arith.constant dense<0.000000e+00> : vector<8x8xf32>
    %50 = tpu.matmul %47, %48, %cst_22 {dimension_numbers = #tpu.dot_dimension_numbers<[1], [1], [0], [0], [0, 0, 1, 0], [], []>} : vector<8x8xf32>, vector<8x8xf32>, vector<8x8xf32> -> vector<8x8xf32>
    %cst_23 = arith.constant dense<0xFF800000> : vector<8xf32>
    %51 = vector.multi_reduction <maximumf>, %50, %cst_23 [1] : vector<8x8xf32> to vector<8xf32>
    %52 = vector.shape_cast %51 : vector<8xf32> to vector<8x1xf32>
    %53 = vector.broadcast %52 : vector<8x1xf32> to vector<8x8xf32>
    %54 = arith.subf %50, %53 : vector<8x8xf32>
    %55 = math.exp %54 : vector<8x8xf32>
    %cst_24 = arith.constant dense<0.000000e+00> : vector<8xf32>
    %56 = vector.multi_reduction <add>, %55, %cst_24 [1] : vector<8x8xf32> to vector<8xf32>
    %57 = vector.shape_cast %56 : vector<8xf32> to vector<8x1xf32>
    %58 = tpu.reciprocal %57 : vector<8x1xf32> -> vector<8x1xf32>
    %59 = vector.broadcast %58 : vector<8x1xf32> to vector<8x8xf32>
    %60 = arith.mulf %55, %59 : vector<8x8xf32>
    %cst_25 = arith.constant dense<0.000000e+00> : vector<8x8xf32>
    %61 = tpu.matmul %60, %49, %cst_25 {dimension_numbers = #tpu.dot_dimension_numbers<[1], [0], [0], [1], [0, 0, 1, 1], [], []>} : vector<8x8xf32>, vector<8x8xf32>, vector<8x8xf32> -> vector<8x8xf32>
    %62 = vector.extract_strided_slice %31 {offsets = [0, 16], sizes = [8, 8], strides = [1, 1]} : vector<8x96xf32> to vector<8x8xf32>
    %63 = vector.extract_strided_slice %31 {offsets = [0, 48], sizes = [8, 8], strides = [1, 1]} : vector<8x96xf32> to vector<8x8xf32>
    %64 = vector.extract_strided_slice %31 {offsets = [0, 80], sizes = [8, 8], strides = [1, 1]} : vector<8x96xf32> to vector<8x8xf32>
    %cst_26 = arith.constant dense<0.000000e+00> : vector<8x8xf32>
    %65 = tpu.matmul %62, %63, %cst_26 {dimension_numbers = #tpu.dot_dimension_numbers<[1], [1], [0], [0], [0, 0, 1, 0], [], []>} : vector<8x8xf32>, vector<8x8xf32>, vector<8x8xf32> -> vector<8x8xf32>
    %cst_27 = arith.constant dense<0xFF800000> : vector<8xf32>
    %66 = vector.multi_reduction <maximumf>, %65, %cst_27 [1] : vector<8x8xf32> to vector<8xf32>
    %67 = vector.shape_cast %66 : vector<8xf32> to vector<8x1xf32>
    %68 = vector.broadcast %67 : vector<8x1xf32> to vector<8x8xf32>
    %69 = arith.subf %65, %68 : vector<8x8xf32>
    %70 = math.exp %69 : vector<8x8xf32>
    %cst_28 = arith.constant dense<0.000000e+00> : vector<8xf32>
    %71 = vector.multi_reduction <add>, %70, %cst_28 [1] : vector<8x8xf32> to vector<8xf32>
    %72 = vector.shape_cast %71 : vector<8xf32> to vector<8x1xf32>
    %73 = tpu.reciprocal %72 : vector<8x1xf32> -> vector<8x1xf32>
    %74 = vector.broadcast %73 : vector<8x1xf32> to vector<8x8xf32>
    %75 = arith.mulf %70, %74 : vector<8x8xf32>
    %cst_29 = arith.constant dense<0.000000e+00> : vector<8x8xf32>
    %76 = tpu.matmul %75, %64, %cst_29 {dimension_numbers = #tpu.dot_dimension_numbers<[1], [0], [0], [1], [0, 0, 1, 1], [], []>} : vector<8x8xf32>, vector<8x8xf32>, vector<8x8xf32> -> vector<8x8xf32>
    %77 = vector.extract_strided_slice %31 {offsets = [0, 24], sizes = [8, 8], strides = [1, 1]} : vector<8x96xf32> to vector<8x8xf32>
    %78 = vector.extract_strided_slice %31 {offsets = [0, 56], sizes = [8, 8], strides = [1, 1]} : vector<8x96xf32> to vector<8x8xf32>
    %79 = vector.extract_strided_slice %31 {offsets = [0, 88], sizes = [8, 8], strides = [1, 1]} : vector<8x96xf32> to vector<8x8xf32>
    %cst_30 = arith.constant dense<0.000000e+00> : vector<8x8xf32>
    %80 = tpu.matmul %77, %78, %cst_30 {dimension_numbers = #tpu.dot_dimension_numbers<[1], [1], [0], [0], [0, 0, 1, 0], [], []>} : vector<8x8xf32>, vector<8x8xf32>, vector<8x8xf32> -> vector<8x8xf32>
    %cst_31 = arith.constant dense<0xFF800000> : vector<8xf32>
    %81 = vector.multi_reduction <maximumf>, %80, %cst_31 [1] : vector<8x8xf32> to vector<8xf32>
    %82 = vector.shape_cast %81 : vector<8xf32> to vector<8x1xf32>
    %83 = vector.broadcast %82 : vector<8x1xf32> to vector<8x8xf32>
    %84 = arith.subf %80, %83 : vector<8x8xf32>
    %85 = math.exp %84 : vector<8x8xf32>
    %cst_32 = arith.constant dense<0.000000e+00> : vector<8xf32>
    %86 = vector.multi_reduction <add>, %85, %cst_32 [1] : vector<8x8xf32> to vector<8xf32>
    %87 = vector.shape_cast %86 : vector<8xf32> to vector<8x1xf32>
    %88 = tpu.reciprocal %87 : vector<8x1xf32> -> vector<8x1xf32>
    %89 = vector.broadcast %88 : vector<8x1xf32> to vector<8x8xf32>
    %90 = arith.mulf %85, %89 : vector<8x8xf32>
    %cst_33 = arith.constant dense<0.000000e+00> : vector<8x8xf32>
    %91 = tpu.matmul %90, %79, %cst_33 {dimension_numbers = #tpu.dot_dimension_numbers<[1], [0], [0], [1], [0, 0, 1, 1], [], []>} : vector<8x8xf32>, vector<8x8xf32>, vector<8x8xf32> -> vector<8x8xf32>
    %92 = tpu.concatenate %46, %61, %76, %91 in 1 : vector<8x8xf32>, vector<8x8xf32>, vector<8x8xf32>, vector<8x8xf32> -> vector<8x32xf32>
    %c0_34 = arith.constant 0 : index
    %c0_35 = arith.constant 0 : index
    %93 = vector.load %arg6[%c0_34, %c0_35] : memref<32x32xf32, #tpu.memory_space<vmem>>, vector<32x32xf32>
    %cst_36 = arith.constant dense<0.000000e+00> : vector<8x32xf32>
    %94 = tpu.matmul %92, %93, %cst_36 {dimension_numbers = #tpu.dot_dimension_numbers<[1], [0], [0], [1], [0, 0, 1, 1], [], []>} : vector<8x32xf32>, vector<32x32xf32>, vector<8x32xf32> -> vector<8x32xf32>
    %95 = arith.addf %0, %94 : vector<8x32xf32>
    %c0_37 = arith.constant 0 : index
    %c0_38 = arith.constant 0 : index
    %96 = vector.load %arg7[%c0_37, %c0_38] : memref<1x32xf32, #tpu.memory_space<vmem>>, vector<1x32xf32>
    %97 = vector.broadcast %96 : vector<1x32xf32> to vector<8x32xf32>
    %98 = arith.addf %95, %97 : vector<8x32xf32>
    %cst_39 = arith.constant dense<0.000000e+00> : vector<8xf32>
    %99 = vector.multi_reduction <add>, %98, %cst_39 [1] : vector<8x32xf32> to vector<8xf32>
    %100 = vector.shape_cast %99 : vector<8xf32> to vector<8x1xf32>
    %cst_40 = arith.constant 3.200000e+01 : f32
    %101 = vector.broadcast %cst_40 : f32 to vector<8x1xf32>
    %102 = arith.divf %100, %101 : vector<8x1xf32>
    %103 = vector.broadcast %102 : vector<8x1xf32> to vector<8x32xf32>
    %104 = arith.subf %98, %103 : vector<8x32xf32>
    %105 = arith.mulf %104, %104 : vector<8x32xf32>
    %cst_41 = arith.constant dense<0.000000e+00> : vector<8xf32>
    %106 = vector.multi_reduction <add>, %105, %cst_41 [1] : vector<8x32xf32> to vector<8xf32>
    %107 = vector.shape_cast %106 : vector<8xf32> to vector<8x1xf32>
    %cst_42 = arith.constant 3.200000e+01 : f32
    %108 = vector.broadcast %cst_42 : f32 to vector<8x1xf32>
    %109 = arith.divf %107, %108 : vector<8x1xf32>
    %110 = vector.broadcast %102 : vector<8x1xf32> to vector<8x32xf32>
    %111 = arith.subf %98, %110 : vector<8x32xf32>
    %cst_43 = arith.constant 9.99999974E-6 : f32
    %112 = vector.broadcast %cst_43 : f32 to vector<8x1xf32>
    %113 = arith.addf %109, %112 : vector<8x1xf32>
    %114 = math.rsqrt %113 : vector<8x1xf32>
    %115 = vector.broadcast %114 : vector<8x1xf32> to vector<8x32xf32>
    %116 = arith.mulf %111, %115 : vector<8x32xf32>
    %117 = vector.broadcast %3 : vector<1x32xf32> to vector<8x32xf32>
    %118 = arith.mulf %116, %117 : vector<8x32xf32>
    %119 = vector.broadcast %4 : vector<1x32xf32> to vector<8x32xf32>
    %120 = arith.addf %118, %119 : vector<8x32xf32>
    %c0_44 = arith.constant 0 : index
    %c0_45 = arith.constant 0 : index
    %121 = vector.load %arg10[%c0_44, %c0_45] : memref<32x128xf32, #tpu.memory_space<vmem>>, vector<32x128xf32>
    %cst_46 = arith.constant dense<0.000000e+00> : vector<8x128xf32>
    %122 = tpu.matmul %120, %121, %cst_46 {dimension_numbers = #tpu.dot_dimension_numbers<[1], [0], [0], [1], [0, 0, 1, 1], [], []>} : vector<8x32xf32>, vector<32x128xf32>, vector<8x128xf32> -> vector<8x128xf32>
    %c0_47 = arith.constant 0 : index
    %c0_48 = arith.constant 0 : index
    %123 = vector.load %arg11[%c0_47, %c0_48] : memref<1x128xf32, #tpu.memory_space<vmem>>, vector<1x128xf32>
    %124 = vector.broadcast %123 : vector<1x128xf32> to vector<8x128xf32>
    %125 = arith.addf %122, %124 : vector<8x128xf32>
    %cst_49 = arith.constant 5.000000e-01 : f32
    %126 = vector.broadcast %cst_49 : f32 to vector<8x128xf32>
    %127 = arith.mulf %126, %125 : vector<8x128xf32>
    %cst_50 = arith.constant 0.707106769 : f32
    %128 = vector.broadcast %cst_50 : f32 to vector<8x128xf32>
    %129 = arith.mulf %125, %128 : vector<8x128xf32>
    %130 = math.erf %129 : vector<8x128xf32>
    %cst_51 = arith.constant 1.000000e+00 : f32
    %131 = vector.broadcast %cst_51 : f32 to vector<8x128xf32>
    %132 = arith.addf %131, %130 : vector<8x128xf32>
    %133 = arith.mulf %127, %132 : vector<8x128xf32>
    %c0_52 = arith.constant 0 : index
    %c0_53 = arith.constant 0 : index
    %134 = vector.load %arg12[%c0_52, %c0_53] : memref<128x32xf32, #tpu.memory_space<vmem>>, vector<128x32xf32>
    %cst_54 = arith.constant dense<0.000000e+00> : vector<8x32xf32>
    %135 = tpu.matmul %133, %134, %cst_54 {dimension_numbers = #tpu.dot_dimension_numbers<[1], [0], [0], [1], [0, 0, 1, 1], [], []>} : vector<8x128xf32>, vector<128x32xf32>, vector<8x32xf32> -> vector<8x32xf32>
    %136 = arith.addf %98, %135 : vector<8x32xf32>
    %c0_55 = arith.constant 0 : index
    %c0_56 = arith.constant 0 : index
    %137 = vector.load %arg13[%c0_55, %c0_56] : memref<1x32xf32, #tpu.memory_space<vmem>>, vector<1x32xf32>
    %138 = vector.broadcast %137 : vector<1x32xf32> to vector<8x32xf32>
    %139 = arith.addf %136, %138 : vector<8x32xf32>
    %cst_57 = arith.constant dense<0.000000e+00> : vector<8xf32>
    %140 = vector.multi_reduction <add>, %139, %cst_57 [1] : vector<8x32xf32> to vector<8xf32>
    %141 = vector.shape_cast %140 : vector<8xf32> to vector<8x1xf32>
    %cst_58 = arith.constant 3.200000e+01 : f32
    %142 = vector.broadcast %cst_58 : f32 to vector<8x1xf32>
    %143 = arith.divf %141, %142 : vector<8x1xf32>
    %144 = vector.broadcast %143 : vector<8x1xf32> to vector<8x32xf32>
    %145 = arith.subf %139, %144 : vector<8x32xf32>
    %146 = arith.mulf %145, %145 : vector<8x32xf32>
    %cst_59 = arith.constant dense<0.000000e+00> : vector<8xf32>
    %147 = vector.multi_reduction <add>, %146, %cst_59 [1] : vector<8x32xf32> to vector<8xf32>
    %148 = vector.shape_cast %147 : vector<8xf32> to vector<8x1xf32>
    %cst_60 = arith.constant 3.200000e+01 : f32
    %149 = vector.broadcast %cst_60 : f32 to vector<8x1xf32>
    %150 = arith.divf %148, %149 : vector<8x1xf32>
    %151 = vector.broadcast %143 : vector<8x1xf32> to vector<8x32xf32>
    %152 = arith.subf %139, %151 : vector<8x32xf32>
    %cst_61 = arith.constant 9.99999974E-6 : f32
    %153 = vector.broadcast %cst_61 : f32 to vector<8x1xf32>
    %154 = arith.addf %150, %153 : vector<8x1xf32>
    %155 = math.rsqrt %154 : vector<8x1xf32>
    %156 = vector.broadcast %155 : vector<8x1xf32> to vector<8x32xf32>
    %157 = arith.mulf %152, %156 : vector<8x32xf32>
    %158 = vector.broadcast %1 : vector<1x32xf32> to vector<8x32xf32>
    %159 = arith.mulf %157, %158 : vector<8x32xf32>
    %160 = vector.broadcast %2 : vector<1x32xf32> to vector<8x32xf32>
    %161 = arith.addf %159, %160 : vector<8x32xf32>
    %c0_62 = arith.constant 0 : index
    %c0_63 = arith.constant 0 : index
    %162 = vector.load %arg4[%c0_62, %c0_63] : memref<32x96xf32, #tpu.memory_space<vmem>>, vector<32x96xf32>
    %cst_64 = arith.constant dense<0.000000e+00> : vector<8x96xf32>
    %163 = tpu.matmul %161, %162, %cst_64 {dimension_numbers = #tpu.dot_dimension_numbers<[1], [0], [0], [1], [0, 0, 1, 1], [], []>} : vector<8x32xf32>, vector<32x96xf32>, vector<8x96xf32> -> vector<8x96xf32>
    %c0_65 = arith.constant 0 : index
    %c0_66 = arith.constant 0 : index
    %164 = vector.load %arg5[%c0_65, %c0_66] : memref<1x96xf32, #tpu.memory_space<vmem>>, vector<1x96xf32>
    %165 = vector.broadcast %164 : vector<1x96xf32> to vector<8x96xf32>
    %166 = arith.addf %163, %165 : vector<8x96xf32>
    %167 = vector.extract_strided_slice %166 {offsets = [0, 0], sizes = [8, 8], strides = [1, 1]} : vector<8x96xf32> to vector<8x8xf32>
    %168 = vector.extract_strided_slice %166 {offsets = [0, 32], sizes = [8, 8], strides = [1, 1]} : vector<8x96xf32> to vector<8x8xf32>
    %169 = vector.extract_strided_slice %166 {offsets = [0, 64], sizes = [8, 8], strides = [1, 1]} : vector<8x96xf32> to vector<8x8xf32>
    %cst_67 = arith.constant dense<0.000000e+00> : vector<8x8xf32>
    %170 = tpu.matmul %167, %168, %cst_67 {dimension_numbers = #tpu.dot_dimension_numbers<[1], [1], [0], [0], [0, 0, 1, 0], [], []>} : vector<8x8xf32>, vector<8x8xf32>, vector<8x8xf32> -> vector<8x8xf32>
    %cst_68 = arith.constant dense<0xFF800000> : vector<8xf32>
    %171 = vector.multi_reduction <maximumf>, %170, %cst_68 [1] : vector<8x8xf32> to vector<8xf32>
    %172 = vector.shape_cast %171 : vector<8xf32> to vector<8x1xf32>
    %173 = vector.broadcast %172 : vector<8x1xf32> to vector<8x8xf32>
    %174 = arith.subf %170, %173 : vector<8x8xf32>
    %175 = math.exp %174 : vector<8x8xf32>
    %cst_69 = arith.constant dense<0.000000e+00> : vector<8xf32>
    %176 = vector.multi_reduction <add>, %175, %cst_69 [1] : vector<8x8xf32> to vector<8xf32>
    %177 = vector.shape_cast %176 : vector<8xf32> to vector<8x1xf32>
    %178 = tpu.reciprocal %177 : vector<8x1xf32> -> vector<8x1xf32>
    %179 = vector.broadcast %178 : vector<8x1xf32> to vector<8x8xf32>
    %180 = arith.mulf %175, %179 : vector<8x8xf32>
    %cst_70 = arith.constant dense<0.000000e+00> : vector<8x8xf32>
    %181 = tpu.matmul %180, %169, %cst_70 {dimension_numbers = #tpu.dot_dimension_numbers<[1], [0], [0], [1], [0, 0, 1, 1], [], []>} : vector<8x8xf32>, vector<8x8xf32>, vector<8x8xf32> -> vector<8x8xf32>
    %182 = vector.extract_strided_slice %166 {offsets = [0, 8], sizes = [8, 8], strides = [1, 1]} : vector<8x96xf32> to vector<8x8xf32>
    %183 = vector.extract_strided_slice %166 {offsets = [0, 40], sizes = [8, 8], strides = [1, 1]} : vector<8x96xf32> to vector<8x8xf32>
    %184 = vector.extract_strided_slice %166 {offsets = [0, 72], sizes = [8, 8], strides = [1, 1]} : vector<8x96xf32> to vector<8x8xf32>
    %cst_71 = arith.constant dense<0.000000e+00> : vector<8x8xf32>
    %185 = tpu.matmul %182, %183, %cst_71 {dimension_numbers = #tpu.dot_dimension_numbers<[1], [1], [0], [0], [0, 0, 1, 0], [], []>} : vector<8x8xf32>, vector<8x8xf32>, vector<8x8xf32> -> vector<8x8xf32>
    %cst_72 = arith.constant dense<0xFF800000> : vector<8xf32>
    %186 = vector.multi_reduction <maximumf>, %185, %cst_72 [1] : vector<8x8xf32> to vector<8xf32>
    %187 = vector.shape_cast %186 : vector<8xf32> to vector<8x1xf32>
    %188 = vector.broadcast %187 : vector<8x1xf32> to vector<8x8xf32>
    %189 = arith.subf %185, %188 : vector<8x8xf32>
    %190 = math.exp %189 : vector<8x8xf32>
    %cst_73 = arith.constant dense<0.000000e+00> : vector<8xf32>
    %191 = vector.multi_reduction <add>, %190, %cst_73 [1] : vector<8x8xf32> to vector<8xf32>
    %192 = vector.shape_cast %191 : vector<8xf32> to vector<8x1xf32>
    %193 = tpu.reciprocal %192 : vector<8x1xf32> -> vector<8x1xf32>
    %194 = vector.broadcast %193 : vector<8x1xf32> to vector<8x8xf32>
    %195 = arith.mulf %190, %194 : vector<8x8xf32>
    %cst_74 = arith.constant dense<0.000000e+00> : vector<8x8xf32>
    %196 = tpu.matmul %195, %184, %cst_74 {dimension_numbers = #tpu.dot_dimension_numbers<[1], [0], [0], [1], [0, 0, 1, 1], [], []>} : vector<8x8xf32>, vector<8x8xf32>, vector<8x8xf32> -> vector<8x8xf32>
    %197 = vector.extract_strided_slice %166 {offsets = [0, 16], sizes = [8, 8], strides = [1, 1]} : vector<8x96xf32> to vector<8x8xf32>
    %198 = vector.extract_strided_slice %166 {offsets = [0, 48], sizes = [8, 8], strides = [1, 1]} : vector<8x96xf32> to vector<8x8xf32>
    %199 = vector.extract_strided_slice %166 {offsets = [0, 80], sizes = [8, 8], strides = [1, 1]} : vector<8x96xf32> to vector<8x8xf32>
    %cst_75 = arith.constant dense<0.000000e+00> : vector<8x8xf32>
    %200 = tpu.matmul %197, %198, %cst_75 {dimension_numbers = #tpu.dot_dimension_numbers<[1], [1], [0], [0], [0, 0, 1, 0], [], []>} : vector<8x8xf32>, vector<8x8xf32>, vector<8x8xf32> -> vector<8x8xf32>
    %cst_76 = arith.constant dense<0xFF800000> : vector<8xf32>
    %201 = vector.multi_reduction <maximumf>, %200, %cst_76 [1] : vector<8x8xf32> to vector<8xf32>
    %202 = vector.shape_cast %201 : vector<8xf32> to vector<8x1xf32>
    %203 = vector.broadcast %202 : vector<8x1xf32> to vector<8x8xf32>
    %204 = arith.subf %200, %203 : vector<8x8xf32>
    %205 = math.exp %204 : vector<8x8xf32>
    %cst_77 = arith.constant dense<0.000000e+00> : vector<8xf32>
    %206 = vector.multi_reduction <add>, %205, %cst_77 [1] : vector<8x8xf32> to vector<8xf32>
    %207 = vector.shape_cast %206 : vector<8xf32> to vector<8x1xf32>
    %208 = tpu.reciprocal %207 : vector<8x1xf32> -> vector<8x1xf32>
    %209 = vector.broadcast %208 : vector<8x1xf32> to vector<8x8xf32>
    %210 = arith.mulf %205, %209 : vector<8x8xf32>
    %cst_78 = arith.constant dense<0.000000e+00> : vector<8x8xf32>
    %211 = tpu.matmul %210, %199, %cst_78 {dimension_numbers = #tpu.dot_dimension_numbers<[1], [0], [0], [1], [0, 0, 1, 1], [], []>} : vector<8x8xf32>, vector<8x8xf32>, vector<8x8xf32> -> vector<8x8xf32>
    %212 = vector.extract_strided_slice %166 {offsets = [0, 24], sizes = [8, 8], strides = [1, 1]} : vector<8x96xf32> to vector<8x8xf32>
    %213 = vector.extract_strided_slice %166 {offsets = [0, 56], sizes = [8, 8], strides = [1, 1]} : vector<8x96xf32> to vector<8x8xf32>
    %214 = vector.extract_strided_slice %166 {offsets = [0, 88], sizes = [8, 8], strides = [1, 1]} : vector<8x96xf32> to vector<8x8xf32>
    %cst_79 = arith.constant dense<0.000000e+00> : vector<8x8xf32>
    %215 = tpu.matmul %212, %213, %cst_79 {dimension_numbers = #tpu.dot_dimension_numbers<[1], [1], [0], [0], [0, 0, 1, 0], [], []>} : vector<8x8xf32>, vector<8x8xf32>, vector<8x8xf32> -> vector<8x8xf32>
    %cst_80 = arith.constant dense<0xFF800000> : vector<8xf32>
    %216 = vector.multi_reduction <maximumf>, %215, %cst_80 [1] : vector<8x8xf32> to vector<8xf32>
    %217 = vector.shape_cast %216 : vector<8xf32> to vector<8x1xf32>
    %218 = vector.broadcast %217 : vector<8x1xf32> to vector<8x8xf32>
    %219 = arith.subf %215, %218 : vector<8x8xf32>
    %220 = math.exp %219 : vector<8x8xf32>
    %cst_81 = arith.constant dense<0.000000e+00> : vector<8xf32>
    %221 = vector.multi_reduction <add>, %220, %cst_81 [1] : vector<8x8xf32> to vector<8xf32>
    %222 = vector.shape_cast %221 : vector<8xf32> to vector<8x1xf32>
    %223 = tpu.reciprocal %222 : vector<8x1xf32> -> vector<8x1xf32>
    %224 = vector.broadcast %223 : vector<8x1xf32> to vector<8x8xf32>
    %225 = arith.mulf %220, %224 : vector<8x8xf32>
    %cst_82 = arith.constant dense<0.000000e+00> : vector<8x8xf32>
    %226 = tpu.matmul %225, %214, %cst_82 {dimension_numbers = #tpu.dot_dimension_numbers<[1], [0], [0], [1], [0, 0, 1, 1], [], []>} : vector<8x8xf32>, vector<8x8xf32>, vector<8x8xf32> -> vector<8x8xf32>
    %227 = tpu.concatenate %181, %196, %211, %226 in 1 : vector<8x8xf32>, vector<8x8xf32>, vector<8x8xf32>, vector<8x8xf32> -> vector<8x32xf32>
    %c0_83 = arith.constant 0 : index
    %c0_84 = arith.constant 0 : index
    %228 = vector.load %arg6[%c0_83, %c0_84] : memref<32x32xf32, #tpu.memory_space<vmem>>, vector<32x32xf32>
    %cst_85 = arith.constant dense<0.000000e+00> : vector<8x32xf32>
    %229 = tpu.matmul %227, %228, %cst_85 {dimension_numbers = #tpu.dot_dimension_numbers<[1], [0], [0], [1], [0, 0, 1, 1], [], []>} : vector<8x32xf32>, vector<32x32xf32>, vector<8x32xf32> -> vector<8x32xf32>
    %230 = arith.addf %139, %229 : vector<8x32xf32>
    %c0_86 = arith.constant 0 : index
    %c0_87 = arith.constant 0 : index
    %231 = vector.load %arg7[%c0_86, %c0_87] : memref<1x32xf32, #tpu.memory_space<vmem>>, vector<1x32xf32>
    %232 = vector.broadcast %231 : vector<1x32xf32> to vector<8x32xf32>
    %233 = arith.addf %230, %232 : vector<8x32xf32>
    %cst_88 = arith.constant dense<0.000000e+00> : vector<8xf32>
    %234 = vector.multi_reduction <add>, %233, %cst_88 [1] : vector<8x32xf32> to vector<8xf32>
    %235 = vector.shape_cast %234 : vector<8xf32> to vector<8x1xf32>
    %cst_89 = arith.constant 3.200000e+01 : f32
    %236 = vector.broadcast %cst_89 : f32 to vector<8x1xf32>
    %237 = arith.divf %235, %236 : vector<8x1xf32>
    %238 = vector.broadcast %237 : vector<8x1xf32> to vector<8x32xf32>
    %239 = arith.subf %233, %238 : vector<8x32xf32>
    %240 = arith.mulf %239, %239 : vector<8x32xf32>
    %cst_90 = arith.constant dense<0.000000e+00> : vector<8xf32>
    %241 = vector.multi_reduction <add>, %240, %cst_90 [1] : vector<8x32xf32> to vector<8xf32>
    %242 = vector.shape_cast %241 : vector<8xf32> to vector<8x1xf32>
    %cst_91 = arith.constant 3.200000e+01 : f32
    %243 = vector.broadcast %cst_91 : f32 to vector<8x1xf32>
    %244 = arith.divf %242, %243 : vector<8x1xf32>
    %245 = vector.broadcast %237 : vector<8x1xf32> to vector<8x32xf32>
    %246 = arith.subf %233, %245 : vector<8x32xf32>
    %cst_92 = arith.constant 9.99999974E-6 : f32
    %247 = vector.broadcast %cst_92 : f32 to vector<8x1xf32>
    %248 = arith.addf %244, %247 : vector<8x1xf32>
    %249 = math.rsqrt %248 : vector<8x1xf32>
    %250 = vector.broadcast %249 : vector<8x1xf32> to vector<8x32xf32>
    %251 = arith.mulf %246, %250 : vector<8x32xf32>
    %252 = vector.broadcast %3 : vector<1x32xf32> to vector<8x32xf32>
    %253 = arith.mulf %251, %252 : vector<8x32xf32>
    %254 = vector.broadcast %4 : vector<1x32xf32> to vector<8x32xf32>
    %255 = arith.addf %253, %254 : vector<8x32xf32>
    %c0_93 = arith.constant 0 : index
    %c0_94 = arith.constant 0 : index
    %256 = vector.load %arg10[%c0_93, %c0_94] : memref<32x128xf32, #tpu.memory_space<vmem>>, vector<32x128xf32>
    %cst_95 = arith.constant dense<0.000000e+00> : vector<8x128xf32>
    %257 = tpu.matmul %255, %256, %cst_95 {dimension_numbers = #tpu.dot_dimension_numbers<[1], [0], [0], [1], [0, 0, 1, 1], [], []>} : vector<8x32xf32>, vector<32x128xf32>, vector<8x128xf32> -> vector<8x128xf32>
    %c0_96 = arith.constant 0 : index
    %c0_97 = arith.constant 0 : index
    %258 = vector.load %arg11[%c0_96, %c0_97] : memref<1x128xf32, #tpu.memory_space<vmem>>, vector<1x128xf32>
    %259 = vector.broadcast %258 : vector<1x128xf32> to vector<8x128xf32>
    %260 = arith.addf %257, %259 : vector<8x128xf32>
    %cst_98 = arith.constant 5.000000e-01 : f32
    %261 = vector.broadcast %cst_98 : f32 to vector<8x128xf32>
    %262 = arith.mulf %261, %260 : vector<8x128xf32>
    %cst_99 = arith.constant 0.707106769 : f32
    %263 = vector.broadcast %cst_99 : f32 to vector<8x128xf32>
    %264 = arith.mulf %260, %263 : vector<8x128xf32>
    %265 = math.erf %264 : vector<8x128xf32>
    %cst_100 = arith.constant 1.000000e+00 : f32
    %266 = vector.broadcast %cst_100 : f32 to vector<8x128xf32>
    %267 = arith.addf %266, %265 : vector<8x128xf32>
    %268 = arith.mulf %262, %267 : vector<8x128xf32>
    %c0_101 = arith.constant 0 : index
    %c0_102 = arith.constant 0 : index
    %269 = vector.load %arg12[%c0_101, %c0_102] : memref<128x32xf32, #tpu.memory_space<vmem>>, vector<128x32xf32>
    %cst_103 = arith.constant dense<0.000000e+00> : vector<8x32xf32>
    %270 = tpu.matmul %268, %269, %cst_103 {dimension_numbers = #tpu.dot_dimension_numbers<[1], [0], [0], [1], [0, 0, 1, 1], [], []>} : vector<8x128xf32>, vector<128x32xf32>, vector<8x32xf32> -> vector<8x32xf32>
    %271 = arith.addf %233, %270 : vector<8x32xf32>
    %c0_104 = arith.constant 0 : index
    %c0_105 = arith.constant 0 : index
    %272 = vector.load %arg13[%c0_104, %c0_105] : memref<1x32xf32, #tpu.memory_space<vmem>>, vector<1x32xf32>
    %273 = vector.broadcast %272 : vector<1x32xf32> to vector<8x32xf32>
    %274 = arith.addf %271, %273 : vector<8x32xf32>
    %c0_106 = arith.constant 0 : index
    %c0_107 = arith.constant 0 : index
    %275 = vector.load %arg14[%c0_106, %c0_107] : memref<8x32xf32, #tpu.memory_space<vmem>>, vector<8x32xf32>
    tpu.vector_store %arg14[%c0_106, %c0_107], %274 {strides = array<i32>} : memref<8x32xf32, #tpu.memory_space<vmem>>, vector<8x32xf32>,
    return
  }
  func.func @transform_0(%arg0: i32) -> (i32, i32) {
    %c0_i32 = arith.constant 0 : i32
    %c0_i32_0 = arith.constant 0 : i32
    return %arg0, %c0_i32 : i32, i32
  }
  func.func @transform_1(%arg0: i32) -> (i32, i32) {
    %c0_i32 = arith.constant 0 : i32
    %c0_i32_0 = arith.constant 0 : i32
    %c0_i32_1 = arith.constant 0 : i32
    return %c0_i32, %c0_i32_0 : i32, i32
  }
  func.func @transform_2(%arg0: i32) -> (i32, i32) {
    %c0_i32 = arith.constant 0 : i32
    %c0_i32_0 = arith.constant 0 : i32
    %c0_i32_1 = arith.constant 0 : i32
    return %c0_i32, %c0_i32_0 : i32, i32
  }
  func.func @transform_3(%arg0: i32) -> (i32, i32) {
    %c0_i32 = arith.constant 0 : i32
    %c0_i32_0 = arith.constant 0 : i32
    %c0_i32_1 = arith.constant 0 : i32
    return %c0_i32, %c0_i32_0 : i32, i32
  }
  func.func @transform_4(%arg0: i32) -> (i32, i32) {
    %c0_i32 = arith.constant 0 : i32
    %c0_i32_0 = arith.constant 0 : i32
    %c0_i32_1 = arith.constant 0 : i32
    return %c0_i32, %c0_i32_0 : i32, i32
  }
  func.func @transform_5(%arg0: i32) -> (i32, i32) {
    %c0_i32 = arith.constant 0 : i32
    %c0_i32_0 = arith.constant 0 : i32
    %c0_i32_1 = arith.constant 0 : i32
    return %c0_i32, %c0_i32_0 : i32, i32
  }
  func.func @transform_6(%arg0: i32) -> (i32, i32) {
    %c0_i32 = arith.constant 0 : i32
    %c0_i32_0 = arith.constant 0 : i32
    %c0_i32_1 = arith.constant 0 : i32
    return %c0_i32, %c0_i32_0 : i32, i32
  }
  func.func @transform_7(%arg0: i32) -> (i32, i32) {
    %c0_i32 = arith.constant 0 : i32
    %c0_i32_0 = arith.constant 0 : i32
    %c0_i32_1 = arith.constant 0 : i32
    return %c0_i32, %c0_i32_0 : i32, i32
  }
  func.func @transform_8(%arg0: i32) -> (i32, i32) {
    %c0_i32 = arith.constant 0 : i32
    %c0_i32_0 = arith.constant 0 : i32
    %c0_i32_1 = arith.constant 0 : i32
    return %c0_i32, %c0_i32_0 : i32, i32
  }
  func.func @transform_9(%arg0: i32) -> (i32, i32) {
    %c0_i32 = arith.constant 0 : i32
    %c0_i32_0 = arith.constant 0 : i32
    %c0_i32_1 = arith.constant 0 : i32
    return %c0_i32, %c0_i32_0 : i32, i32
  }
  func.func @transform_10(%arg0: i32) -> (i32, i32) {
    %c0_i32 = arith.constant 0 : i32
    %c0_i32_0 = arith.constant 0 : i32
    %c0_i32_1 = arith.constant 0 : i32
    return %c0_i32, %c0_i32_0 : i32, i32
  }
  func.func @transform_11(%arg0: i32) -> (i32, i32) {
    %c0_i32 = arith.constant 0 : i32
    %c0_i32_0 = arith.constant 0 : i32
    %c0_i32_1 = arith.constant 0 : i32
    return %c0_i32, %c0_i32_0 : i32, i32
  }
  func.func @transform_12(%arg0: i32) -> (i32, i32) {
    %c0_i32 = arith.constant 0 : i32
    %c0_i32_0 = arith.constant 0 : i32
    %c0_i32_1 = arith.constant 0 : i32
    return %c0_i32, %c0_i32_0 : i32, i32
  }
  func.func @transform_13(%arg0: i32) -> (i32, i32) {
    %c0_i32 = arith.constant 0 : i32
    %c0_i32_0 = arith.constant 0 : i32
    return %arg0, %c0_i32 : i32, i32
  }
}

</mosaic_0001>

<llo_original>
// kernel: mul.9
$region0: #{mul.9}
  #allocation0 [shape = 's32[1]{0}', space=sflag, size = 0x4, scoped, tag = 'scoped memory for mul.9']
  %s0 = inlined_call_operand.vmem [shape: f32[1,96], index: 0, kind: input, shape index: {}]
  %s1 = inlined_call_operand.vmem [shape: f32[1,96], index: 1, kind: input, shape index: {}]
  %s2 = inlined_call_operand.vmem [shape: f32[1,96], index: 2, kind: output, shape index: {}]
  %v3 = vld [vmem:[%s0] sm:$0x1]
  %v4 = vld [vmem:[%s1] sm:$0x1]
  %5 = xla_tuple %v3, %v4
  %6 = xla_tuple %5
  %v7 = vmul.f32 %v3, %v4
  %8 = xla_tuple %v7
  %9 = vst [vmem:[%s2] sm:$0x1] %v7

// kernel: tiny_vit_block.1
$region0: #{tiny_vit_block.1}
  #allocation0 [shape = 'u32[]', space=smem, size = 0x4, offset = 0x4, fixed_abs, tag = 'smem constant byte address 0x4 - core index']
  #allocation1 [shape = 'u32[72,128]{1,0:T(1,128)}', space=vmem, size = 0x9000, scoped, tag = 'internal scratch']
  %s0 = inlined_call_operand.vmem [shape: f32[16,32], index: 0, kind: input, shape index: {}]
  %s1 = inlined_call_operand.vmem [shape: f32[1,32], index: 1, kind: input, shape index: {}]
  %s2 = inlined_call_operand.vmem [shape: f32[1,32], index: 2, kind: input, shape index: {}]
  %s3 = inlined_call_operand.vmem [shape: f32[32,96], index: 3, kind: input, shape index: {}]
  %s4 = inlined_call_operand.vmem [shape: f32[1,96], index: 4, kind: input, shape index: {}]
  %s5 = inlined_call_operand.vmem [shape: f32[32,32], index: 5, kind: input, shape index: {}]
  %s6 = inlined_call_operand.vmem [shape: f32[1,32], index: 6, kind: input, shape index: {}]
  %s7 = inlined_call_operand.vmem [shape: f32[1,32], index: 7, kind: input, shape index: {}]
  %s8 = inlined_call_operand.vmem [shape: f32[1,32], index: 8, kind: input, shape index: {}]
  %s9 = inlined_call_operand.vmem [shape: f32[32,128], index: 9, kind: input, shape index: {}]
  %s10 = inlined_call_operand.vmem [shape: f32[1,128], index: 10, kind: input, shape index: {}]
  %s11 = inlined_call_operand.vmem [shape: f32[128,32], index: 11, kind: input, shape index: {}]
  %s12 = inlined_call_operand.vmem [shape: f32[1,32], index: 12, kind: input, shape index: {}]
  %s13 = inlined_call_operand.hbm [shape: f32[16,32], index: 13, kind: output, shape index: {}]
  %s14 = sld [smem:[#allocation0]]
  $region85: #{tiny_vit_block.1} parent=0
    _
  %s16 = ssub.s32 1, %s14
  %s17 = scalar_select 0, %s16, %s14
  $region1: #{tiny_vit_block.1} parent=0
    #allocation2 [shape = 'u8[8192]{0}', space=vmem, size = 0x2000, scoped, tag = 'output window, operand 0']
    #allocation3 [shape = 's32[2]{0}', space=sflag, size = 0x8, scoped, tag = 'scoped memory for tiny_vit_block.1']
    %18 = vsyncpa [#allocation3], 0
    %s19 = scalar_lea.sflag [#allocation3], 1
    %20 = vsyncpa %s19, 0
    loop: start=0, step=1, limit=4
    $region2: #{tiny_vit_block.1} parent=1 // loop_pre_header
      _
    $region3: #{tiny_vit_block.1} parent=1 // loop_header
      %s22 = sphi 0, %s26
      %p23 = scmp.ge.s32.totalorder %s22, 4
      %s32 = sphi 0, %s34
      %s35 = sphi 0, %s32
      %s36 = sphi 0, %s35
      %s52 = sphi 0, %s36
      %s56 = sphi 0, %s56
      %s58 = sphi 0, %s56
      %s59 = sphi 0, %s58
      %s73 = sphi 0, %s59
      %s77 = sphi 0, %s77
      %s79 = sphi 0, %s77
      %s80 = sphi 0, %s79
      %s94 = sphi 0, %s80
      %s98 = sphi 0, %s98
      %s100 = sphi 0, %s98
      %s101 = sphi 0, %s100
      %s115 = sphi 0, %s101
      %s119 = sphi 0, %s119
      %s121 = sphi 0, %s119
      %s122 = sphi 0, %s121
      %s136 = sphi 0, %s122
      %s140 = sphi 0, %s140
      %s142 = sphi 0, %s140
      %s143 = sphi 0, %s142
      %s157 = sphi 0, %s143
      %s161 = sphi 0, %s161
      %s163 = sphi 0, %s161
      %s164 = sphi 0, %s163
      %s178 = sphi 0, %s164
      %s182 = sphi 0, %s182
      %s184 = sphi 0, %s182
      %s185 = sphi 0, %s184
      %s199 = sphi 0, %s185
      %s203 = sphi 0, %s203
      %s205 = sphi 0, %s203
      %s206 = sphi 0, %s205
      %s220 = sphi 0, %s206
      %s224 = sphi 0, %s224
      %s226 = sphi 0, %s224
      %s227 = sphi 0, %s226
      %s241 = sphi 0, %s227
      %s245 = sphi 0, %s245
      %s247 = sphi 0, %s245
      %s248 = sphi 0, %s247
      %s262 = sphi 0, %s248
      %s266 = sphi 0, %s266
      %s268 = sphi 0, %s266
      %s269 = sphi 0, %s268
      %s283 = sphi 0, %s269
      %s287 = sphi 0, %s287
      %s289 = sphi 0, %s287
      %s290 = sphi 0, %s289
      %s304 = sphi 0, %s290
      %s310 = sphi 0, %s312
      %s313 = sphi 0, %s310
      %s314 = sphi 0, %s313
      %s330 = sphi 0, %s314
    $region4: #{tiny_vit_block.1} parent=1 // loop_header_branch
      %25 = sbr.rel (%p23) target = $region8
    $region5: #{tiny_vit_block.1} parent=1 // loop_body
      %s27 = ssub.s32 %s22, 1
      %s28 = ssub.s32 %s22, 2
      %s29 = sadd.s32 %s22, 1
      %s30 = ssub.s32 %s22, %s29
      %p31 = scmp.eq.s32.totalorder %s30, 0
      %s33 = sadd.s32 %s32, 1
      %s34 = scalar_select %p31, %s32, %s33
      %p37 = pneg %p31
      %p38 = scmp.eq.s32.totalorder %s22, 1
      %p39 = por %p37, %p38
      %p40 = scmp.ne.s32.totalorder %s32, %s35
      %p41 = scmp.eq.s32.totalorder %s22, 0
      %p42 = por %p40, %p41
      %p43 = scmp.ne.s32.totalorder %s32, %s35
      %p44 = scmp.eq.s32.totalorder %s27, 1
      %p45 = por %p43, %p44
      %p46 = scmp.ne.s32.totalorder %s35, %s36
      %p47 = scmp.eq.s32.totalorder %s27, 0
      %p48 = por %p46, %p47
      %p49 = scmp.ne.s32.totalorder %s35, %s36
      %p50 = scmp.eq.s32.totalorder %s28, 1
      %p51 = por %p49, %p50
      %p53 = scmp.ne.s32.totalorder %s36, %s52
      %p54 = scmp.eq.s32.totalorder %s28, 0
      %p55 = por %p53, %p54
      %s57 = sadd.s32 %s56, 1
      %p60 = scmp.eq.s32.totalorder %s22, 1
      %p61 = scmp.ne.s32.totalorder %s56, %s58
      %p62 = scmp.eq.s32.totalorder %s22, 0
      %p63 = por %p61, %p62
      %p64 = scmp.ne.s32.totalorder %s56, %s58
      %p65 = scmp.eq.s32.totalorder %s27, 1
      %p66 = por %p64, %p65
      %p67 = scmp.ne.s32.totalorder %s58, %s59
      %p68 = scmp.eq.s32.totalorder %s27, 0
      %p69 = por %p67, %p68
      %p70 = scmp.ne.s32.totalorder %s58, %s59
      %p71 = scmp.eq.s32.totalorder %s28, 1
      %p72 = por %p70, %p71
      %p74 = scmp.ne.s32.totalorder %s59, %s73
      %p75 = scmp.eq.s32.totalorder %s28, 0
      %p76 = por %p74, %p75
      %s78 = sadd.s32 %s77, 1
      %p81 = scmp.eq.s32.totalorder %s22, 1
      %p82 = scmp.ne.s32.totalorder %s77, %s79
      %p83 = scmp.eq.s32.totalorder %s22, 0
      %p84 = por %p82, %p83
      %p85 = scmp.ne.s32.totalorder %s77, %s79
      %p86 = scmp.eq.s32.totalorder %s27, 1
      %p87 = por %p85, %p86
      %p88 = scmp.ne.s32.totalorder %s79, %s80
      %p89 = scmp.eq.s32.totalorder %s27, 0
      %p90 = por %p88, %p89
      %p91 = scmp.ne.s32.totalorder %s79, %s80
      %p92 = scmp.eq.s32.totalorder %s28, 1
      %p93 = por %p91, %p92
      %p95 = scmp.ne.s32.totalorder %s80, %s94
      %p96 = scmp.eq.s32.totalorder %s28, 0
      %p97 = por %p95, %p96
      %s99 = sadd.s32 %s98, 1
      %p102 = scmp.eq.s32.totalorder %s22, 1
      %p103 = scmp.ne.s32.totalorder %s98, %s100
      %p104 = scmp.eq.s32.totalorder %s22, 0
      %p105 = por %p103, %p104
      %p106 = scmp.ne.s32.totalorder %s98, %s100
      %p107 = scmp.eq.s32.totalorder %s27, 1
      %p108 = por %p106, %p107
      %p109 = scmp.ne.s32.totalorder %s100, %s101
      %p110 = scmp.eq.s32.totalorder %s27, 0
      %p111 = por %p109, %p110
      %p112 = scmp.ne.s32.totalorder %s100, %s101
      %p113 = scmp.eq.s32.totalorder %s28, 1
      %p114 = por %p112, %p113
      %p116 = scmp.ne.s32.totalorder %s101, %s115
      %p117 = scmp.eq.s32.totalorder %s28, 0
      %p118 = por %p116, %p117
      %s120 = sadd.s32 %s119, 1
      %p123 = scmp.eq.s32.totalorder %s22, 1
      %p124 = scmp.ne.s32.totalorder %s119, %s121
      %p125 = scmp.eq.s32.totalorder %s22, 0
      %p126 = por %p124, %p125
      %p127 = scmp.ne.s32.totalorder %s119, %s121
      %p128 = scmp.eq.s32.totalorder %s27, 1
      %p129 = por %p127, %p128
      %p130 = scmp.ne.s32.totalorder %s121, %s122
      %p131 = scmp.eq.s32.totalorder %s27, 0
      %p132 = por %p130, %p131
      %p133 = scmp.ne.s32.totalorder %s121, %s122
      %p134 = scmp.eq.s32.totalorder %s28, 1
      %p135 = por %p133, %p134
      %p137 = scmp.ne.s32.totalorder %s122, %s136
      %p138 = scmp.eq.s32.totalorder %s28, 0
      %p139 = por %p137, %p138
      %s141 = sadd.s32 %s140, 1
      %p144 = scmp.eq.s32.totalorder %s22, 1
      %p145 = scmp.ne.s32.totalorder %s140, %s142
      %p146 = scmp.eq.s32.totalorder %s22, 0
      %p147 = por %p145, %p146
      %p148 = scmp.ne.s32.totalorder %s140, %s142
      %p149 = scmp.eq.s32.totalorder %s27, 1
      %p150 = por %p148, %p149
      %p151 = scmp.ne.s32.totalorder %s142, %s143
      %p152 = scmp.eq.s32.totalorder %s27, 0
      %p153 = por %p151, %p152
      %p154 = scmp.ne.s32.totalorder %s142, %s143
      %p155 = scmp.eq.s32.totalorder %s28, 1
      %p156 = por %p154, %p155
      %p158 = scmp.ne.s32.totalorder %s143, %s157
      %p159 = scmp.eq.s32.totalorder %s28, 0
      %p160 = por %p158, %p159
      %s162 = sadd.s32 %s161, 1
      %p165 = scmp.eq.s32.totalorder %s22, 1
      %p166 = scmp.ne.s32.totalorder %s161, %s163
      %p167 = scmp.eq.s32.totalorder %s22, 0
      %p168 = por %p166, %p167
      %p169 = scmp.ne.s32.totalorder %s161, %s163
      %p170 = scmp.eq.s32.totalorder %s27, 1
      %p171 = por %p169, %p170
      %p172 = scmp.ne.s32.totalorder %s163, %s164
      %p173 = scmp.eq.s32.totalorder %s27, 0
      %p174 = por %p172, %p173
      %p175 = scmp.ne.s32.totalorder %s163, %s164
      %p176 = scmp.eq.s32.totalorder %s28, 1
      %p177 = por %p175, %p176
      %p179 = scmp.ne.s32.totalorder %s164, %s178
      %p180 = scmp.eq.s32.totalorder %s28, 0
      %p181 = por %p179, %p180
      %s183 = sadd.s32 %s182, 1
      %p186 = scmp.eq.s32.totalorder %s22, 1
      %p187 = scmp.ne.s32.totalorder %s182, %s184
      %p188 = scmp.eq.s32.totalorder %s22, 0
      %p189 = por %p187, %p188
      %p190 = scmp.ne.s32.totalorder %s182, %s184
      %p191 = scmp.eq.s32.totalorder %s27, 1
      %p192 = por %p190, %p191
      %p193 = scmp.ne.s32.totalorder %s184, %s185
      %p194 = scmp.eq.s32.totalorder %s27, 0
      %p195 = por %p193, %p194
      %p196 = scmp.ne.s32.totalorder %s184, %s185
      %p197 = scmp.eq.s32.totalorder %s28, 1
      %p198 = por %p196, %p197
      %p200 = scmp.ne.s32.totalorder %s185, %s199
      %p201 = scmp.eq.s32.totalorder %s28, 0
      %p202 = por %p200, %p201
      %s204 = sadd.s32 %s203, 1
      %p207 = scmp.eq.s32.totalorder %s22, 1
      %p208 = scmp.ne.s32.totalorder %s203, %s205
      %p209 = scmp.eq.s32.totalorder %s22, 0
      %p210 = por %p208, %p209
      %p211 = scmp.ne.s32.totalorder %s203, %s205
      %p212 = scmp.eq.s32.totalorder %s27, 1
      %p213 = por %p211, %p212
      %p214 = scmp.ne.s32.totalorder %s205, %s206
      %p215 = scmp.eq.s32.totalorder %s27, 0
      %p216 = por %p214, %p215
      %p217 = scmp.ne.s32.totalorder %s205, %s206
      %p218 = scmp.eq.s32.totalorder %s28, 1
      %p219 = por %p217, %p218
      %p221 = scmp.ne.s32.totalorder %s206, %s220
      %p222 = scmp.eq.s32.totalorder %s28, 0
      %p223 = por %p221, %p222
      %s225 = sadd.s32 %s224, 1
      %p228 = scmp.eq.s32.totalorder %s22, 1
      %p229 = scmp.ne.s32.totalorder %s224, %s226
      %p230 = scmp.eq.s32.totalorder %s22, 0
      %p231 = por %p229, %p230
      %p232 = scmp.ne.s32.totalorder %s224, %s226
      %p233 = scmp.eq.s32.totalorder %s27, 1
      %p234 = por %p232, %p233
      %p235 = scmp.ne.s32.totalorder %s226, %s227
      %p236 = scmp.eq.s32.totalorder %s27, 0
      %p237 = por %p235, %p236
      %p238 = scmp.ne.s32.totalorder %s226, %s227
      %p239 = scmp.eq.s32.totalorder %s28, 1
      %p240 = por %p238, %p239
      %p242 = scmp.ne.s32.totalorder %s227, %s241
      %p243 = scmp.eq.s32.totalorder %s28, 0
      %p244 = por %p242, %p243
      %s246 = sadd.s32 %s245, 1
      %p249 = scmp.eq.s32.totalorder %s22, 1
      %p250 = scmp.ne.s32.totalorder %s245, %s247
      %p251 = scmp.eq.s32.totalorder %s22, 0
      %p252 = por %p250, %p251
      %p253 = scmp.ne.s32.totalorder %s245, %s247
      %p254 = scmp.eq.s32.totalorder %s27, 1
      %p255 = por %p253, %p254
      %p256 = scmp.ne.s32.totalorder %s247, %s248
      %p257 = scmp.eq.s32.totalorder %s27, 0
      %p258 = por %p256, %p257
      %p259 = scmp.ne.s32.totalorder %s247, %s248
      %p260 = scmp.eq.s32.totalorder %s28, 1
      %p261 = por %p259, %p260
      %p263 = scmp.ne.s32.totalorder %s248, %s262
      %p264 = scmp.eq.s32.totalorder %s28, 0
      %p265 = por %p263, %p264
      %s267 = sadd.s32 %s266, 1
      %p270 = scmp.eq.s32.totalorder %s22, 1
      %p271 = scmp.ne.s32.totalorder %s266, %s268
      %p272 = scmp.eq.s32.totalorder %s22, 0
      %p273 = por %p271, %p272
      %p274 = scmp.ne.s32.totalorder %s266, %s268
      %p275 = scmp.eq.s32.totalorder %s27, 1
      %p276 = por %p274, %p275
      %p277 = scmp.ne.s32.totalorder %s268, %s269
      %p278 = scmp.eq.s32.totalorder %s27, 0
      %p279 = por %p277, %p278
      %p280 = scmp.ne.s32.totalorder %s268, %s269
      %p281 = scmp.eq.s32.totalorder %s28, 1
      %p282 = por %p280, %p281
      %p284 = scmp.ne.s32.totalorder %s269, %s283
      %p285 = scmp.eq.s32.totalorder %s28, 0
      %p286 = por %p284, %p285
      %s288 = sadd.s32 %s287, 1
      %p291 = scmp.eq.s32.totalorder %s22, 1
      %p292 = scmp.ne.s32.totalorder %s287, %s289
      %p293 = scmp.eq.s32.totalorder %s22, 0
      %p294 = por %p292, %p293
      %p295 = scmp.ne.s32.totalorder %s287, %s289
      %p296 = scmp.eq.s32.totalorder %s27, 1
      %p297 = por %p295, %p296
      %p298 = scmp.ne.s32.totalorder %s289, %s290
      %p299 = scmp.eq.s32.totalorder %s27, 0
      %p300 = por %p298, %p299
      %p301 = scmp.ne.s32.totalorder %s289, %s290
      %p302 = scmp.eq.s32.totalorder %s28, 1
      %p303 = por %p301, %p302
      %p305 = scmp.ne.s32.totalorder %s290, %s304
      %p306 = scmp.eq.s32.totalorder %s28, 0
      %p307 = por %p305, %p306
      %s308 = ssub.s32 %s22, %s29
      %p309 = scmp.eq.s32.totalorder %s308, 0
      %s311 = sadd.s32 %s310, 1
      %s312 = scalar_select %p309, %s310, %s311
      %p315 = pneg %p309
      %p316 = scmp.eq.s32.totalorder %s22, 1
      %p317 = por %p315, %p316
      %p318 = scmp.ne.s32.totalorder %s310, %s313
      %p319 = scmp.eq.s32.totalorder %s22, 0
      %p320 = por %p318, %p319
      %p321 = scmp.ne.s32.totalorder %s310, %s313
      %p322 = scmp.eq.s32.totalorder %s27, 1
      %p323 = por %p321, %p322
      %p324 = scmp.ne.s32.totalorder %s313, %s314
      %p325 = scmp.eq.s32.totalorder %s27, 0
      %p326 = por %p324, %p325
      %p327 = scmp.ne.s32.totalorder %s313, %s314
      %p328 = scmp.eq.s32.totalorder %s28, 1
      %p329 = por %p327, %p328
      %p331 = scmp.ne.s32.totalorder %s314, %s330
      %p332 = scmp.eq.s32.totalorder %s28, 0
      %p333 = por %p331, %p332
      %p334 = scmp.le.s32.totalorder 1, %s22
      %p335 = scmp.lt.s32.totalorder %s22, 3
      %p336 = pnand %p334, %p335
      %p337 = pneg %p336
      // Predicated region
      $region9: #{tiny_vit_block.1} parent=5 // pred_check
        _
      $region10: #{tiny_vit_block.1} parent=5 // pred_check_branch
        %339 = sbr.rel (%p336) target = $region12
      $region11: #{tiny_vit_block.1} parent=5 // pred_region
        %s340 = ssub.s32 %s22, 1
        // Predicated region
        $region13: #{tiny_vit_block.1} parent=11 // pred_check
          %p341 = pneg %p69
        $region14: #{tiny_vit_block.1} parent=11 // pred_check_branch
          %343 = sbr.rel (%p341) target = $region16
        $region15: #{tiny_vit_block.1} parent=11 // pred_region
          _
        $region16: #{tiny_vit_block.1} parent=11 // pred_fallthru
          _
        // Predicated region
        $region17: #{tiny_vit_block.1} parent=11 // pred_check
          %p344 = pneg %p90
        $region18: #{tiny_vit_block.1} parent=11 // pred_check_branch
          %346 = sbr.rel (%p344) target = $region20
        $region19: #{tiny_vit_block.1} parent=11 // pred_region
          _
        $region20: #{tiny_vit_block.1} parent=11 // pred_fallthru
          _
        // Predicated region
        $region21: #{tiny_vit_block.1} parent=11 // pred_check
          %p347 = pneg %p111
        $region22: #{tiny_vit_block.1} parent=11 // pred_check_branch
          %349 = sbr.rel (%p347) target = $region24
        $region23: #{tiny_vit_block.1} parent=11 // pred_region
          _
        $region24: #{tiny_vit_block.1} parent=11 // pred_fallthru
          _
        // Predicated region
        $region25: #{tiny_vit_block.1} parent=11 // pred_check
          %p350 = pneg %p132
        $region26: #{tiny_vit_block.1} parent=11 // pred_check_branch
          %352 = sbr.rel (%p350) target = $region28
        $region27: #{tiny_vit_block.1} parent=11 // pred_region
          _
        $region28: #{tiny_vit_block.1} parent=11 // pred_fallthru
          _
        // Predicated region
        $region29: #{tiny_vit_block.1} parent=11 // pred_check
          %p353 = pneg %p153
        $region30: #{tiny_vit_block.1} parent=11 // pred_check_branch
          %355 = sbr.rel (%p353) target = $region32
        $region31: #{tiny_vit_block.1} parent=11 // pred_region
          _
        $region32: #{tiny_vit_block.1} parent=11 // pred_fallthru
          _
        // Predicated region
        $region33: #{tiny_vit_block.1} parent=11 // pred_check
          %p356 = pneg %p174
        $region34: #{tiny_vit_block.1} parent=11 // pred_check_branch
          %358 = sbr.rel (%p356) target = $region36
        $region35: #{tiny_vit_block.1} parent=11 // pred_region
          _
        $region36: #{tiny_vit_block.1} parent=11 // pred_fallthru
          _
        // Predicated region
        $region37: #{tiny_vit_block.1} parent=11 // pred_check
          %p359 = pneg %p195
        $region38: #{tiny_vit_block.1} parent=11 // pred_check_branch
          %361 = sbr.rel (%p359) target = $region40
        $region39: #{tiny_vit_block.1} parent=11 // pred_region
          _
        $region40: #{tiny_vit_block.1} parent=11 // pred_fallthru
          _
        // Predicated region
        $region41: #{tiny_vit_block.1} parent=11 // pred_check
          %p362 = pneg %p216
        $region42: #{tiny_vit_block.1} parent=11 // pred_check_branch
          %364 = sbr.rel (%p362) target = $region44
        $region43: #{tiny_vit_block.1} parent=11 // pred_region
          _
        $region44: #{tiny_vit_block.1} parent=11 // pred_fallthru
          _
        // Predicated region
        $region45: #{tiny_vit_block.1} parent=11 // pred_check
          %p365 = pneg %p237
        $region46: #{tiny_vit_block.1} parent=11 // pred_check_branch
          %367 = sbr.rel (%p365) target = $region48
        $region47: #{tiny_vit_block.1} parent=11 // pred_region
          _
        $region48: #{tiny_vit_block.1} parent=11 // pred_fallthru
          _
        // Predicated region
        $region49: #{tiny_vit_block.1} parent=11 // pred_check
          %p368 = pneg %p258
        $region50: #{tiny_vit_block.1} parent=11 // pred_check_branch
          %370 = sbr.rel (%p368) target = $region52
        $region51: #{tiny_vit_block.1} parent=11 // pred_region
          _
        $region52: #{tiny_vit_block.1} parent=11 // pred_fallthru
          _
        // Predicated region
        $region53: #{tiny_vit_block.1} parent=11 // pred_check
          %p371 = pneg %p279
        $region54: #{tiny_vit_block.1} parent=11 // pred_check_branch
          %373 = sbr.rel (%p371) target = $region56
        $region55: #{tiny_vit_block.1} parent=11 // pred_region
          _
        $region56: #{tiny_vit_block.1} parent=11 // pred_fallthru
          _
        // Predicated region
        $region57: #{tiny_vit_block.1} parent=11 // pred_check
          %p374 = pneg %p300
        $region58: #{tiny_vit_block.1} parent=11 // pred_check_branch
          %376 = sbr.rel (%p374) target = $region60
        $region59: #{tiny_vit_block.1} parent=11 // pred_region
          _
        $region60: #{tiny_vit_block.1} parent=11 // pred_fallthru
          _
      $region12: #{tiny_vit_block.1} parent=5 // pred_fallthru
        _
      %p377 = scmp.lt.s32.totalorder %s22, 2
      // Predicated region
      $region61: #{tiny_vit_block.1} parent=5 // pred_check
        %p378 = pneg %p377
      $region62: #{tiny_vit_block.1} parent=5 // pred_check_branch
        %380 = sbr.rel (%p378) target = $region64
      $region63: #{tiny_vit_block.1} parent=5 // pred_region
        // Predicated region
        $region65: #{tiny_vit_block.1} parent=63 // pred_check
          %p381 = pneg %p42
        $region66: #{tiny_vit_block.1} parent=63 // pred_check_branch
          %383 = sbr.rel (%p381) target = $region68
        $region67: #{tiny_vit_block.1} parent=63 // pred_region
          %p384 = scmp.lt.s32.totalorder %s22, 1
          %s385 = scalar_select %p384, %s22, 1
          %s386 = smul.addr %s385, 8
          %s387 = scalar_lea.vmem %s0, %s386
        $region68: #{tiny_vit_block.1} parent=63 // pred_fallthru
          _
      $region64: #{tiny_vit_block.1} parent=5 // pred_fallthru
        _
      %p388 = scmp.le.s32.totalorder 1, %s22
      %p389 = scmp.lt.s32.totalorder %s22, 3
      %p390 = pnand %p388, %p389
      %p391 = pneg %p390
      // Predicated region
      $region69: #{tiny_vit_block.1} parent=5 // pred_check
        _
      $region70: #{tiny_vit_block.1} parent=5 // pred_check_branch
        %393 = sbr.rel (%p390) target = $region72
      $region71: #{tiny_vit_block.1} parent=5 // pred_region
        %s394 = ssub.s32 %s22, 1
        %p395 = scmp.lt.s32.totalorder %s27, 1
        %s396 = scalar_select %p395, %s27, 1
        %s397 = smul.addr %s396, 8
        %s398 = scalar_lea.vmem %s0, %s397
        %p399 = pneg %p48
        %p400 = pneg %p45
        %p401 = pneg %p69
        %p402 = pneg %p66
        %p403 = pneg %p90
        %p404 = pneg %p87
        %p405 = pneg %p111
        %p406 = pneg %p108
        %p407 = pneg %p132
        %p408 = pneg %p129
        %p409 = pneg %p153
        %p410 = pneg %p150
        %p411 = pneg %p174
        %p412 = pneg %p171
        %p413 = pneg %p195
        %p414 = pneg %p192
        %p415 = pneg %p216
        %p416 = pneg %p213
        %p417 = pneg %p237
        %p418 = pneg %p234
        %p419 = pneg %p258
        %p420 = pneg %p255
        %p421 = pneg %p279
        %p422 = pneg %p276
        %p423 = pneg %p300
        %p424 = pneg %p297
        %p425 = pneg %p326
        %p426 = pneg %p323
        %s427 = sand.u32 %s313, 1
        %s428 = scalar_lea.sflag [#allocation3], %s427
        %s429 = sand.u32 %s313, 1
        %s430 = smul.addr %s429, 8
        %s431 = scalar_lea.vmem [#allocation2], %s430
        %p432 = scmp.lt.s32.totalorder %s27, 1
        %s433 = scalar_select %p432, %s27, 1
        %s434 = smul.addr %s433, 8
        %s435 = scalar_lea.vmem %s0, %s434
        %v436 = vld [vmem:[%s435] sm:$0xff]
        %v437 = vld [vmem:[%s1] sm:$0x1]
        %v438 = vld [vmem:[%s2] sm:$0x1]
        %v439 = vld [vmem:[%s7] sm:$0x1]
        %v440 = vld [vmem:[%s8] sm:$0x1]
        %vm441 = vcmask 261120
        %v442 = vsel %vm441, %v436, 0.0
        %443 = vadd.xlane.f32.xlu0 %v442
        %v444 = vpop.xlane.xlu0 %443
        %v445 = vrcp.pop 32.0
        %v446 = vmul.f32 32.0, %v445
        %v447 = vsub.f32 1.0, %v446
        %v448 = vmul.f32 %v445, %v447
        %v449 = vadd.f32 %v445, %v448
        %vm450 = vweird.f32 %v445
        %v451 = vsel %vm450, %v445, %v449
        %v452 = vmul.f32 %v444, %v451
        %v453 = vsub.f32 %v436, %v452
        %v454 = vmul.f32 %v453, %v453
        %v455 = vsel %vm441, %v454, 0.0
        %456 = vadd.xlane.f32.xlu0 %v455
        %v457 = vpop.xlane.xlu0 %456
        %v458 = vmul.f32 %v457, %v451
        %v459 = vadd.f32 %v458, 1e-05
        %v460 = vrsqrt.pop %v459
        %v461 = vmul.f32 %v460, %v459
        %v462 = vmul.f32 %v461, %v460
        %v463 = vmul.f32 0.5, %v462
        %v464 = vsub.f32 1.5, %v463
        %v465 = vmul.f32 %v460, %v464
        %vm466 = vweird.f32 %v459
        %vm467 = vweird.f32 %v460
        %vm468 = vmor %vm466, %vm467
        %v469 = vsel %vm468, %v460, %v465
        %v470 = vmul.f32 %v453, %v469
        %v472 = vperm.slane %v437, 0
        %v474 = vmul.f32 %v470, %v472
        %v476 = vperm.slane %v438, 0
        %v478 = vadd.f32 %v474, %v476
        %v479 = vld [vmem:[%s3] sm:$0xff]
        %v480 = vld [vmem:[%s3 + $0x8] sm:$0xff]
        %v481 = vld [vmem:[%s3 + $0x10] sm:$0xff]
        %v482 = vld [vmem:[%s3 + $0x18] sm:$0xff]
        %v483 = vld [vmem:[%s4] sm:$0x1]
        %v485 = vperm.slane %v483, 0
        %v488 = vsel %vm441, %v478, 0
        %490 = vmatpush.msra.mxu0 0.0
        %491 = vmatpush.msra.mxu0 0.0
        %492 = vmatpush.msra.mxu0 0.0
        %493 = vmatpush.msra.mxu0 0.0
        %494 = vmatpush.msra.mxu0 0.0
        %495 = vmatpush.msra.mxu0 0.0
        %496 = vmatpush.msra.mxu0 0.0
        %497 = vmatpush.msra.mxu0 0.0
        %498 = vmatpush.msra.mxu0 0.0
        %499 = vmatpush.msra.mxu0 0.0
        %500 = vmatpush.msra.mxu0 0.0
        %501 = vmatpush.msra.mxu0 0.0
        %502 = vmatpush.msra.mxu0 %v482
        %503 = vmatpush.msra.mxu0 %v481
        %504 = vmatpush.msra.mxu0 %v480
        %505 = vmatpush.msra.mxu0 %v479
        %506 = vmatmul.f32.gmra.mxu0 %v488
        %v507 = vpop.f32.mrf.mxu0
        %v508 = vadd.f32 %v485, %v507
        %509 = vdwg.mxu0
        %511 = vrot.lane.b32.xlu0 %v508, 96
        %v512 = vpop.permute.xlu0 %511
        %vm513 = vcmask 64512
        %v514 = vsel %vm513, %v508, 0
        %v516 = vsel %vm513, %v512, 0
        %518 = vmatpush.xpose.msra.mxu0 0.0
        %519 = vmatpush.xpose.msra.mxu0 0.0
        %520 = vmatpush.xpose.msra.mxu0 0.0
        %521 = vmatpush.xpose.msra.mxu0 0.0
        %522 = vmatpush.xpose.msra.mxu0 0.0
        %523 = vmatpush.xpose.msra.mxu0 0.0
        %524 = vmatpush.xpose.msra.mxu0 0.0
        %525 = vmatpush.xpose.msra.mxu0 0.0
        %526 = vmatpush.xpose.msra.mxu0 0.0
        %527 = vmatpush.xpose.msra.mxu0 0.0
        %528 = vmatpush.xpose.msra.mxu0 0.0
        %529 = vmatpush.xpose.msra.mxu0 0.0
        %530 = vmatpush.xpose.msra.mxu0 0.0
        %531 = vmatpush.xpose.msra.mxu0 0.0
        %532 = vmatpush.xpose.msra.mxu0 0.0
        %533 = vmatpush.xpose.msra.mxu0 %v516
        %534 = vmatmul.f32.gmra.mxu0 %v514
        %v535 = vpop.f32.mrf.mxu0
        %v536 = vadd.f32 0.0, %v535
        %537 = vdwg.mxu0
        %v538 = vsel %vm513, %v536, -inf
        %539 = vmax.xlane.f32.xlu0 %v538
        %v540 = vpop.xlane.xlu0 %539
        %v541 = vsub.f32 %v536, %v540
        %v542 = vmul.f32 %v541, 1.442695
        %v543 = vpow.pop %v542
        %v544 = vsel %vm513, %v543, 0.0
        %545 = vadd.xlane.f32.xlu0 %v544
        %v546 = vpop.xlane.xlu0 %545
        %v547 = vrcp.pop %v546
        %v548 = vmul.f32 %v546, %v547
        %v549 = vsub.f32 1.0, %v548
        %v550 = vmul.f32 %v547, %v549
        %v551 = vadd.f32 %v547, %v550
        %vm552 = vweird.f32 %v546
        %vm553 = vweird.f32 %v547
        %vm554 = vmor %vm552, %vm553
        %v555 = vsel %vm554, %v547, %v551
        %v556 = vand.u32 2147483647, %v546
        %vm557 = vcmp.eq.f32.partialorder %v556, 8.507059e+37
        %v558 = vand.u32 %v546, 2147483648
        %v559 = vor.u32 1.1754944e-38, %v558
        %v560 = vsel %vm557, %v559, %v555
        %v561 = vmul.f32 %v543, %v560
        %562 = vrot.lane.b32.xlu0 %v508, 64
        %v563 = vpop.permute.xlu0 %562
        %v566 = vsel %vm513, %v561, 0
        %568 = vmatpush.msra.mxu0 0.0
        %569 = vmatpush.msra.mxu0 0.0
        %570 = vmatpush.msra.mxu0 0.0
        %571 = vmatpush.msra.mxu0 0.0
        %572 = vmatpush.msra.mxu0 0.0
        %573 = vmatpush.msra.mxu0 0.0
        %574 = vmatpush.msra.mxu0 0.0
        %575 = vmatpush.msra.mxu0 0.0
        %576 = vmatpush.msra.mxu0 0.0
        %577 = vmatpush.msra.mxu0 0.0
        %578 = vmatpush.msra.mxu0 0.0
        %579 = vmatpush.msra.mxu0 0.0
        %580 = vmatpush.msra.mxu0 0.0
        %581 = vmatpush.msra.mxu0 0.0
        %582 = vmatpush.msra.mxu0 0.0
        %583 = vmatpush.msra.mxu0 %v563
        %584 = vmatmul.f32.gmra.mxu0 %v566
        %v585 = vpop.f32.mrf.mxu0
        %v586 = vadd.f32 0.0, %v585
        %587 = vdwg.mxu0
        %588 = vrot.lane.b32.xlu0 %v508, 120
        %v589 = vpop.permute.xlu0 %588
        %590 = vrot.lane.b32.xlu0 %v508, 88
        %v591 = vpop.permute.xlu0 %590
        %v592 = vsel %vm513, %v589, 0
        %v594 = vsel %vm513, %v591, 0
        %596 = vmatpush.xpose.msra.mxu0 0.0
        %597 = vmatpush.xpose.msra.mxu0 0.0
        %598 = vmatpush.xpose.msra.mxu0 0.0
        %599 = vmatpush.xpose.msra.mxu0 0.0
        %600 = vmatpush.xpose.msra.mxu0 0.0
        %601 = vmatpush.xpose.msra.mxu0 0.0
        %602 = vmatpush.xpose.msra.mxu0 0.0
        %603 = vmatpush.xpose.msra.mxu0 0.0
        %604 = vmatpush.xpose.msra.mxu0 0.0
        %605 = vmatpush.xpose.msra.mxu0 0.0
        %606 = vmatpush.xpose.msra.mxu0 0.0
        %607 = vmatpush.xpose.msra.mxu0 0.0
        %608 = vmatpush.xpose.msra.mxu0 0.0
        %609 = vmatpush.xpose.msra.mxu0 0.0
        %610 = vmatpush.xpose.msra.mxu0 0.0
        %611 = vmatpush.xpose.msra.mxu0 %v594
        %612 = vmatmul.f32.gmra.mxu0 %v592
        %v613 = vpop.f32.mrf.mxu0
        %v614 = vadd.f32 0.0, %v613
        %615 = vdwg.mxu0
        %v616 = vsel %vm513, %v614, -inf
        %617 = vmax.xlane.f32.xlu0 %v616
        %v618 = vpop.xlane.xlu0 %617
        %v619 = vsub.f32 %v614, %v618
        %v620 = vmul.f32 %v619, 1.442695
        %v621 = vpow.pop %v620
        %v622 = vsel %vm513, %v621, 0.0
        %623 = vadd.xlane.f32.xlu0 %v622
        %v624 = vpop.xlane.xlu0 %623
        %v625 = vrcp.pop %v624
        %v626 = vmul.f32 %v624, %v625
        %v627 = vsub.f32 1.0, %v626
        %v628 = vmul.f32 %v625, %v627
        %v629 = vadd.f32 %v625, %v628
        %vm630 = vweird.f32 %v624
        %vm631 = vweird.f32 %v625
        %vm632 = vmor %vm630, %vm631
        %v633 = vsel %vm632, %v625, %v629
        %v634 = vand.u32 2147483647, %v624
        %vm635 = vcmp.eq.f32.partialorder %v634, 8.507059e+37
        %v636 = vand.u32 %v624, 2147483648
        %v637 = vor.u32 1.1754944e-38, %v636
        %v638 = vsel %vm635, %v637, %v633
        %v639 = vmul.f32 %v621, %v638
        %640 = vrot.lane.b32.xlu0 %v508, 56
        %v641 = vpop.permute.xlu0 %640
        %v644 = vsel %vm513, %v639, 0
        %646 = vmatpush.msra.mxu0 0.0
        %647 = vmatpush.msra.mxu0 0.0
        %648 = vmatpush.msra.mxu0 0.0
        %649 = vmatpush.msra.mxu0 0.0
        %650 = vmatpush.msra.mxu0 0.0
        %651 = vmatpush.msra.mxu0 0.0
        %652 = vmatpush.msra.mxu0 0.0
        %653 = vmatpush.msra.mxu0 0.0
        %654 = vmatpush.msra.mxu0 0.0
        %655 = vmatpush.msra.mxu0 0.0
        %656 = vmatpush.msra.mxu0 0.0
        %657 = vmatpush.msra.mxu0 0.0
        %658 = vmatpush.msra.mxu0 0.0
        %659 = vmatpush.msra.mxu0 0.0
        %660 = vmatpush.msra.mxu0 0.0
        %661 = vmatpush.msra.mxu0 %v641
        %662 = vmatmul.f32.gmra.mxu0 %v644
        %v663 = vpop.f32.mrf.mxu0
        %v664 = vadd.f32 0.0, %v663
        %665 = vdwg.mxu0
        %666 = vrot.lane.b32.xlu0 %v508, 112
        %v667 = vpop.permute.xlu0 %666
        %668 = vrot.lane.b32.xlu0 %v508, 80
        %v669 = vpop.permute.xlu0 %668
        %v670 = vsel %vm513, %v667, 0
        %v672 = vsel %vm513, %v669, 0
        %674 = vmatpush.xpose.msra.mxu0 0.0
        %675 = vmatpush.xpose.msra.mxu0 0.0
        %676 = vmatpush.xpose.msra.mxu0 0.0
        %677 = vmatpush.xpose.msra.mxu0 0.0
        %678 = vmatpush.xpose.msra.mxu0 0.0
        %679 = vmatpush.xpose.msra.mxu0 0.0
        %680 = vmatpush.xpose.msra.mxu0 0.0
        %681 = vmatpush.xpose.msra.mxu0 0.0
        %682 = vmatpush.xpose.msra.mxu0 0.0
        %683 = vmatpush.xpose.msra.mxu0 0.0
        %684 = vmatpush.xpose.msra.mxu0 0.0
        %685 = vmatpush.xpose.msra.mxu0 0.0
        %686 = vmatpush.xpose.msra.mxu0 0.0
        %687 = vmatpush.xpose.msra.mxu0 0.0
        %688 = vmatpush.xpose.msra.mxu0 0.0
        %689 = vmatpush.xpose.msra.mxu0 %v672
        %690 = vmatmul.f32.gmra.mxu0 %v670
        %v691 = vpop.f32.mrf.mxu0
        %v692 = vadd.f32 0.0, %v691
        %693 = vdwg.mxu0
        %v694 = vsel %vm513, %v692, -inf
        %695 = vmax.xlane.f32.xlu0 %v694
        %v696 = vpop.xlane.xlu0 %695
        %v697 = vsub.f32 %v692, %v696
        %v698 = vmul.f32 %v697, 1.442695
        %v699 = vpow.pop %v698
        %v700 = vsel %vm513, %v699, 0.0
        %701 = vadd.xlane.f32.xlu0 %v700
        %v702 = vpop.xlane.xlu0 %701
        %v703 = vrcp.pop %v702
        %v704 = vmul.f32 %v702, %v703
        %v705 = vsub.f32 1.0, %v704
        %v706 = vmul.f32 %v703, %v705
        %v707 = vadd.f32 %v703, %v706
        %vm708 = vweird.f32 %v702
        %vm709 = vweird.f32 %v703
        %vm710 = vmor %vm708, %vm709
        %v711 = vsel %vm710, %v703, %v707
        %v712 = vand.u32 2147483647, %v702
        %vm713 = vcmp.eq.f32.partialorder %v712, 8.507059e+37
        %v714 = vand.u32 %v702, 2147483648
        %v715 = vor.u32 1.1754944e-38, %v714
        %v716 = vsel %vm713, %v715, %v711
        %v717 = vmul.f32 %v699, %v716
        %718 = vrot.lane.b32.xlu0 %v508, 48
        %v719 = vpop.permute.xlu0 %718
        %v722 = vsel %vm513, %v717, 0
        %724 = vmatpush.msra.mxu0 0.0
        %725 = vmatpush.msra.mxu0 0.0
        %726 = vmatpush.msra.mxu0 0.0
        %727 = vmatpush.msra.mxu0 0.0
        %728 = vmatpush.msra.mxu0 0.0
        %729 = vmatpush.msra.mxu0 0.0
        %730 = vmatpush.msra.mxu0 0.0
        %731 = vmatpush.msra.mxu0 0.0
        %732 = vmatpush.msra.mxu0 0.0
        %733 = vmatpush.msra.mxu0 0.0
        %734 = vmatpush.msra.mxu0 0.0
        %735 = vmatpush.msra.mxu0 0.0
        %736 = vmatpush.msra.mxu0 0.0
        %737 = vmatpush.msra.mxu0 0.0
        %738 = vmatpush.msra.mxu0 0.0
        %739 = vmatpush.msra.mxu0 %v719
        %740 = vmatmul.f32.gmra.mxu0 %v722
        %v741 = vpop.f32.mrf.mxu0
        %v742 = vadd.f32 0.0, %v741
        %743 = vdwg.mxu0
        %744 = vrot.lane.b32.xlu0 %v508, 104
        %v745 = vpop.permute.xlu0 %744
        %746 = vrot.lane.b32.xlu0 %v508, 72
        %v747 = vpop.permute.xlu0 %746
        %v748 = vsel %vm513, %v745, 0
        %v750 = vsel %vm513, %v747, 0
        %752 = vmatpush.xpose.msra.mxu0 0.0
        %753 = vmatpush.xpose.msra.mxu0 0.0
        %754 = vmatpush.xpose.msra.mxu0 0.0
        %755 = vmatpush.xpose.msra.mxu0 0.0
        %756 = vmatpush.xpose.msra.mxu0 0.0
        %757 = vmatpush.xpose.msra.mxu0 0.0
        %758 = vmatpush.xpose.msra.mxu0 0.0
        %759 = vmatpush.xpose.msra.mxu0 0.0
        %760 = vmatpush.xpose.msra.mxu0 0.0
        %761 = vmatpush.xpose.msra.mxu0 0.0
        %762 = vmatpush.xpose.msra.mxu0 0.0
        %763 = vmatpush.xpose.msra.mxu0 0.0
        %764 = vmatpush.xpose.msra.mxu0 0.0
        %765 = vmatpush.xpose.msra.mxu0 0.0
        %766 = vmatpush.xpose.msra.mxu0 0.0
        %767 = vmatpush.xpose.msra.mxu0 %v750
        %768 = vmatmul.f32.gmra.mxu0 %v748
        %v769 = vpop.f32.mrf.mxu0
        %v770 = vadd.f32 0.0, %v769
        %771 = vdwg.mxu0
        %v772 = vsel %vm513, %v770, -inf
        %773 = vmax.xlane.f32.xlu0 %v772
        %v774 = vpop.xlane.xlu0 %773
        %v775 = vsub.f32 %v770, %v774
        %v776 = vmul.f32 %v775, 1.442695
        %v777 = vpow.pop %v776
        %v778 = vsel %vm513, %v777, 0.0
        %779 = vadd.xlane.f32.xlu0 %v778
        %v780 = vpop.xlane.xlu0 %779
        %v781 = vrcp.pop %v780
        %v782 = vmul.f32 %v780, %v781
        %v783 = vsub.f32 1.0, %v782
        %v784 = vmul.f32 %v781, %v783
        %v785 = vadd.f32 %v781, %v784
        %vm786 = vweird.f32 %v780
        %vm787 = vweird.f32 %v781
        %vm788 = vmor %vm786, %vm787
        %v789 = vsel %vm788, %v781, %v785
        %v790 = vand.u32 2147483647, %v780
        %vm791 = vcmp.eq.f32.partialorder %v790, 8.507059e+37
        %v792 = vand.u32 %v780, 2147483648
        %v793 = vor.u32 1.1754944e-38, %v792
        %v794 = vsel %vm791, %v793, %v789
        %v795 = vmul.f32 %v777, %v794
        %796 = vrot.lane.b32.xlu0 %v508, 40
        %v797 = vpop.permute.xlu0 %796
        %v800 = vsel %vm513, %v795, 0
        %802 = vmatpush.msra.mxu0 0.0
        %803 = vmatpush.msra.mxu0 0.0
        %804 = vmatpush.msra.mxu0 0.0
        %805 = vmatpush.msra.mxu0 0.0
        %806 = vmatpush.msra.mxu0 0.0
        %807 = vmatpush.msra.mxu0 0.0
        %808 = vmatpush.msra.mxu0 0.0
        %809 = vmatpush.msra.mxu0 0.0
        %810 = vmatpush.msra.mxu0 0.0
        %811 = vmatpush.msra.mxu0 0.0
        %812 = vmatpush.msra.mxu0 0.0
        %813 = vmatpush.msra.mxu0 0.0
        %814 = vmatpush.msra.mxu0 0.0
        %815 = vmatpush.msra.mxu0 0.0
        %816 = vmatpush.msra.mxu0 0.0
        %817 = vmatpush.msra.mxu0 %v797
        %818 = vmatmul.f32.gmra.mxu0 %v800
        %v819 = vpop.f32.mrf.mxu0
        %v820 = vadd.f32 0.0, %v819
        %821 = vdwg.mxu0
        %823 = vrot.lane.b32.xlu0 %v664, 8
        %v824 = vpop.permute.xlu0 %823
        %827 = vrot.lane.b32.xlu0 %v742, 16
        %v828 = vpop.permute.xlu0 %827
        %831 = vrot.lane.b32.xlu0 %v820, 24
        %v832 = vpop.permute.xlu0 %831
        %v834 = vsel %vm513, %v586, %v824
        %vm835 = vcmask 130048
        %v836 = vsel %vm835, %v834, %v828
        %vm837 = vcmask 195584
        %v838 = vsel %vm837, %v836, %v832
        %v839 = vld [vmem:[%s5] sm:$0xff]
        %v840 = vld [vmem:[%s5 + $0x8] sm:$0xff]
        %v841 = vld [vmem:[%s5 + $0x10] sm:$0xff]
        %v842 = vld [vmem:[%s5 + $0x18] sm:$0xff]
        %v844 = vsel %vm441, %v838, 0
        %846 = vmatpush.msra.mxu0 0.0
        %847 = vmatpush.msra.mxu0 0.0
        %848 = vmatpush.msra.mxu0 0.0
        %849 = vmatpush.msra.mxu0 0.0
        %850 = vmatpush.msra.mxu0 0.0
        %851 = vmatpush.msra.mxu0 0.0
        %852 = vmatpush.msra.mxu0 0.0
        %853 = vmatpush.msra.mxu0 0.0
        %854 = vmatpush.msra.mxu0 0.0
        %855 = vmatpush.msra.mxu0 0.0
        %856 = vmatpush.msra.mxu0 0.0
        %857 = vmatpush.msra.mxu0 0.0
        %858 = vmatpush.msra.mxu0 %v842
        %859 = vmatpush.msra.mxu0 %v841
        %860 = vmatpush.msra.mxu0 %v840
        %861 = vmatpush.msra.mxu0 %v839
        %862 = vmatmul.f32.gmra.mxu0 %v844
        %v863 = vpop.f32.mrf.mxu0
        %v864 = vadd.f32 0.0, %v863
        %865 = vdwg.mxu0
        %v866 = vadd.f32 %v436, %v864
        %v867 = vld [vmem:[%s6] sm:$0x1]
        %v869 = vperm.slane %v867, 0
        %v871 = vadd.f32 %v866, %v869
        %v872 = vsel %vm441, %v871, 0.0
        %873 = vadd.xlane.f32.xlu0 %v872
        %v874 = vpop.xlane.xlu0 %873
        %v875 = vmul.f32 %v874, %v451
        %v876 = vsub.f32 %v871, %v875
        %v877 = vmul.f32 %v876, %v876
        %v878 = vsel %vm441, %v877, 0.0
        %879 = vadd.xlane.f32.xlu0 %v878
        %v880 = vpop.xlane.xlu0 %879
        %v881 = vmul.f32 %v880, %v451
        %v882 = vadd.f32 %v881, 1e-05
        %v883 = vrsqrt.pop %v882
        %v884 = vmul.f32 %v883, %v882
        %v885 = vmul.f32 %v884, %v883
        %v886 = vmul.f32 0.5, %v885
        %v887 = vsub.f32 1.5, %v886
        %v888 = vmul.f32 %v883, %v887
        %vm889 = vweird.f32 %v882
        %vm890 = vweird.f32 %v883
        %vm891 = vmor %vm889, %vm890
        %v892 = vsel %vm891, %v883, %v888
        %v893 = vmul.f32 %v876, %v892
        %v895 = vperm.slane %v439, 0
        %v897 = vmul.f32 %v893, %v895
        %v899 = vperm.slane %v440, 0
        %v901 = vadd.f32 %v897, %v899
        %v902 = vld [vmem:[%s9] sm:$0xff]
        %v903 = vld [vmem:[%s9 + $0x8] sm:$0xff]
        %v904 = vld [vmem:[%s9 + $0x10] sm:$0xff]
        %v905 = vld [vmem:[%s9 + $0x18] sm:$0xff]
        %v906 = vld [vmem:[%s10] sm:$0x1]
        %v908 = vperm.slane %v906, 0
        %v911 = vsel %vm441, %v901, 0
        %913 = vmatpush.msra.mxu0 0.0
        %914 = vmatpush.msra.mxu0 0.0
        %915 = vmatpush.msra.mxu0 0.0
        %916 = vmatpush.msra.mxu0 0.0
        %917 = vmatpush.msra.mxu0 0.0
        %918 = vmatpush.msra.mxu0 0.0
        %919 = vmatpush.msra.mxu0 0.0
        %920 = vmatpush.msra.mxu0 0.0
        %921 = vmatpush.msra.mxu0 0.0
        %922 = vmatpush.msra.mxu0 0.0
        %923 = vmatpush.msra.mxu0 0.0
        %924 = vmatpush.msra.mxu0 0.0
        %925 = vmatpush.msra.mxu0 %v905
        %926 = vmatpush.msra.mxu0 %v904
        %927 = vmatpush.msra.mxu0 %v903
        %928 = vmatpush.msra.mxu0 %v902
        %929 = vmatmul.f32.gmra.mxu0 %v911
        %v930 = vpop.f32.mrf.mxu0
        %v931 = vadd.f32 %v908, %v930
        %932 = vdwg.mxu0
        %v933 = vmul.f32 %v931, 0.5
        %v934 = vmul.f32 %v931, 0.70710677
        %v935 = vmul.f32 %v934, %v934
        %v936 = vmin.f32 16.0, %v935
        %v937 = vmul.f32 %v936, 2.1237322e-06
        %v938 = vadd.f32 %v937, 0.00028619796
        %v939 = vmul.f32 %v936, %v938
        %v940 = vadd.f32 %v939, 0.0036580483
        %v941 = vmul.f32 %v936, %v940
        %v942 = vadd.f32 %v941, 0.05243302
        %v943 = vmul.f32 %v936, %v942
        %v944 = vadd.f32 %v943, 0.18741608
        %v945 = vmul.f32 %v936, %v944
        %v946 = vadd.f32 %v945, 1.1283791
        %v947 = vmul.f32 %v934, %v946
        %v948 = vmul.f32 %v936, 3.8918573e-05
        %v949 = vadd.f32 %v948, 0.001143296
        %v950 = vmul.f32 %v936, %v949
        %v951 = vadd.f32 %v950, 0.014752088
        %v952 = vmul.f32 %v936, %v951
        %v953 = vadd.f32 %v952, 0.112945676
        %v954 = vmul.f32 %v936, %v953
        %v955 = vadd.f32 %v954, 0.4994258
        %v956 = vmul.f32 %v936, %v955
        %v957 = vadd.f32 %v956, 1.0
        %v958 = vrcp.pop %v957
        %v959 = vmul.f32 %v957, %v958
        %v960 = vsub.f32 1.0, %v959
        %v961 = vmul.f32 %v958, %v960
        %v962 = vadd.f32 %v958, %v961
        %vm963 = vweird.f32 %v957
        %vm964 = vweird.f32 %v958
        %vm965 = vmor %vm963, %vm964
        %v966 = vsel %vm965, %v958, %v962
        %v967 = vand.u32 2147483647, %v957
        %vm968 = vcmp.eq.f32.partialorder %v967, 8.507059e+37
        %v969 = vand.u32 %v957, 2147483648
        %v970 = vor.u32 1.1754944e-38, %v969
        %v971 = vsel %vm968, %v970, %v966
        %v972 = vmul.f32 %v947, %v971
        %v973 = vmin.f32 %v972, 1.0
        %v974 = vmax.f32 %v973, -1.0
        %v975 = vadd.f32 %v974, 1.0
        %v976 = vmul.f32 %v933, %v975
        %v977 = vld [vmem:[%s11] sm:$0xff]
        %v978 = vld [vmem:[%s11 + $0x8] sm:$0xff]
        %v979 = vld [vmem:[%s11 + $0x10] sm:$0xff]
        %v980 = vld [vmem:[%s11 + $0x18] sm:$0xff]
        %v981 = vld [vmem:[%s11 + $0x20] sm:$0xff]
        %v982 = vld [vmem:[%s11 + $0x28] sm:$0xff]
        %v983 = vld [vmem:[%s11 + $0x30] sm:$0xff]
        %v984 = vld [vmem:[%s11 + $0x38] sm:$0xff]
        %v985 = vld [vmem:[%s11 + $0x40] sm:$0xff]
        %v986 = vld [vmem:[%s11 + $0x48] sm:$0xff]
        %v987 = vld [vmem:[%s11 + $0x50] sm:$0xff]
        %v988 = vld [vmem:[%s11 + $0x58] sm:$0xff]
        %v989 = vld [vmem:[%s11 + $0x60] sm:$0xff]
        %v990 = vld [vmem:[%s11 + $0x68] sm:$0xff]
        %v991 = vld [vmem:[%s11 + $0x70] sm:$0xff]
        %v992 = vld [vmem:[%s11 + $0x78] sm:$0xff]
        %993 = vmatpush.msra.mxu0 %v992
        %994 = vmatpush.msra.mxu0 %v991
        %995 = vmatpush.msra.mxu0 %v990
        %996 = vmatpush.msra.mxu0 %v989
        %997 = vmatpush.msra.mxu0 %v988
        %998 = vmatpush.msra.mxu0 %v987
        %999 = vmatpush.msra.mxu0 %v986
        %1000 = vmatpush.msra.mxu0 %v985
        %1001 = vmatpush.msra.mxu0 %v984
        %1002 = vmatpush.msra.mxu0 %v983
        %1003 = vmatpush.msra.mxu0 %v982
        %1004 = vmatpush.msra.mxu0 %v981
        %1005 = vmatpush.msra.mxu0 %v980
        %1006 = vmatpush.msra.mxu0 %v979
        %1007 = vmatpush.msra.mxu0 %v978
        %1008 = vmatpush.msra.mxu0 %v977
        %1009 = vmatmul.f32.gmra.mxu0 %v976
        %v1010 = vpop.f32.mrf.mxu0
        %v1011 = vadd.f32 0.0, %v1010
        %1012 = vdwg.mxu0
        %v1013 = vadd.f32 %v871, %v1011
        %v1014 = vld [vmem:[%s12] sm:$0x1]
        %v1016 = vperm.slane %v1014, 0
        %v1018 = vadd.f32 %v1013, %v1016
        %v1019 = vsel %vm441, %v1018, 0.0
        %1020 = vadd.xlane.f32.xlu0 %v1019
        %v1021 = vpop.xlane.xlu0 %1020
        %v1022 = vmul.f32 %v1021, %v451
        %v1023 = vsub.f32 %v1018, %v1022
        %v1024 = vmul.f32 %v1023, %v1023
        %v1025 = vsel %vm441, %v1024, 0.0
        %1026 = vadd.xlane.f32.xlu0 %v1025
        %v1027 = vpop.xlane.xlu0 %1026
        %v1028 = vmul.f32 %v1027, %v451
        %v1029 = vadd.f32 %v1028, 1e-05
        %v1030 = vrsqrt.pop %v1029
        %v1031 = vmul.f32 %v1030, %v1029
        %v1032 = vmul.f32 %v1031, %v1030
        %v1033 = vmul.f32 0.5, %v1032
        %v1034 = vsub.f32 1.5, %v1033
        %v1035 = vmul.f32 %v1030, %v1034
        %vm1036 = vweird.f32 %v1029
        %vm1037 = vweird.f32 %v1030
        %vm1038 = vmor %vm1036, %vm1037
        %v1039 = vsel %vm1038, %v1030, %v1035
        %v1040 = vmul.f32 %v1023, %v1039
        %v1041 = vmul.f32 %v1040, %v472
        %v1042 = vadd.f32 %v1041, %v476
        %v1044 = vsel %vm441, %v1042, 0
        %1046 = vmatpush.msra.mxu0 0.0
        %1047 = vmatpush.msra.mxu0 0.0
        %1048 = vmatpush.msra.mxu0 0.0
        %1049 = vmatpush.msra.mxu0 0.0
        %1050 = vmatpush.msra.mxu0 0.0
        %1051 = vmatpush.msra.mxu0 0.0
        %1052 = vmatpush.msra.mxu0 0.0
        %1053 = vmatpush.msra.mxu0 0.0
        %1054 = vmatpush.msra.mxu0 0.0
        %1055 = vmatpush.msra.mxu0 0.0
        %1056 = vmatpush.msra.mxu0 0.0
        %1057 = vmatpush.msra.mxu0 0.0
        %1058 = vmatpush.msra.mxu0 %v482
        %1059 = vmatpush.msra.mxu0 %v481
        %1060 = vmatpush.msra.mxu0 %v480
        %1061 = vmatpush.msra.mxu0 %v479
        %1062 = vmatmul.f32.gmra.mxu0 %v1044
        %v1063 = vpop.f32.mrf.mxu0
        %v1064 = vadd.f32 %v485, %v1063
        %1065 = vdwg.mxu0
        %1067 = vrot.lane.b32.xlu0 %v1064, 96
        %v1068 = vpop.permute.xlu0 %1067
        %v1069 = vsel %vm513, %v1064, 0
        %v1071 = vsel %vm513, %v1068, 0
        %1073 = vmatpush.xpose.msra.mxu0 0.0
        %1074 = vmatpush.xpose.msra.mxu0 0.0
        %1075 = vmatpush.xpose.msra.mxu0 0.0
        %1076 = vmatpush.xpose.msra.mxu0 0.0
        %1077 = vmatpush.xpose.msra.mxu0 0.0
        %1078 = vmatpush.xpose.msra.mxu0 0.0
        %1079 = vmatpush.xpose.msra.mxu0 0.0
        %1080 = vmatpush.xpose.msra.mxu0 0.0
        %1081 = vmatpush.xpose.msra.mxu0 0.0
        %1082 = vmatpush.xpose.msra.mxu0 0.0
        %1083 = vmatpush.xpose.msra.mxu0 0.0
        %1084 = vmatpush.xpose.msra.mxu0 0.0
        %1085 = vmatpush.xpose.msra.mxu0 0.0
        %1086 = vmatpush.xpose.msra.mxu0 0.0
        %1087 = vmatpush.xpose.msra.mxu0 0.0
        %1088 = vmatpush.xpose.msra.mxu0 %v1071
        %1089 = vmatmul.f32.gmra.mxu0 %v1069
        %v1090 = vpop.f32.mrf.mxu0
        %v1091 = vadd.f32 0.0, %v1090
        %1092 = vdwg.mxu0
        %v1093 = vsel %vm513, %v1091, -inf
        %1094 = vmax.xlane.f32.xlu0 %v1093
        %v1095 = vpop.xlane.xlu0 %1094
        %v1096 = vsub.f32 %v1091, %v1095
        %v1097 = vmul.f32 %v1096, 1.442695
        %v1098 = vpow.pop %v1097
        %v1099 = vsel %vm513, %v1098, 0.0
        %1100 = vadd.xlane.f32.xlu0 %v1099
        %v1101 = vpop.xlane.xlu0 %1100
        %v1102 = vrcp.pop %v1101
        %v1103 = vmul.f32 %v1101, %v1102
        %v1104 = vsub.f32 1.0, %v1103
        %v1105 = vmul.f32 %v1102, %v1104
        %v1106 = vadd.f32 %v1102, %v1105
        %vm1107 = vweird.f32 %v1101
        %vm1108 = vweird.f32 %v1102
        %vm1109 = vmor %vm1107, %vm1108
        %v1110 = vsel %vm1109, %v1102, %v1106
        %v1111 = vand.u32 2147483647, %v1101
        %vm1112 = vcmp.eq.f32.partialorder %v1111, 8.507059e+37
        %v1113 = vand.u32 %v1101, 2147483648
        %v1114 = vor.u32 1.1754944e-38, %v1113
        %v1115 = vsel %vm1112, %v1114, %v1110
        %v1116 = vmul.f32 %v1098, %v1115
        %1117 = vrot.lane.b32.xlu0 %v1064, 64
        %v1118 = vpop.permute.xlu0 %1117
        %v1121 = vsel %vm513, %v1116, 0
        %1123 = vmatpush.msra.mxu0 0.0
        %1124 = vmatpush.msra.mxu0 0.0
        %1125 = vmatpush.msra.mxu0 0.0
        %1126 = vmatpush.msra.mxu0 0.0
        %1127 = vmatpush.msra.mxu0 0.0
        %1128 = vmatpush.msra.mxu0 0.0
        %1129 = vmatpush.msra.mxu0 0.0
        %1130 = vmatpush.msra.mxu0 0.0
        %1131 = vmatpush.msra.mxu0 0.0
        %1132 = vmatpush.msra.mxu0 0.0
        %1133 = vmatpush.msra.mxu0 0.0
        %1134 = vmatpush.msra.mxu0 0.0
        %1135 = vmatpush.msra.mxu0 0.0
        %1136 = vmatpush.msra.mxu0 0.0
        %1137 = vmatpush.msra.mxu0 0.0
        %1138 = vmatpush.msra.mxu0 %v1118
        %1139 = vmatmul.f32.gmra.mxu0 %v1121
        %v1140 = vpop.f32.mrf.mxu0
        %v1141 = vadd.f32 0.0, %v1140
        %1142 = vdwg.mxu0
        %1143 = vrot.lane.b32.xlu0 %v1064, 120
        %v1144 = vpop.permute.xlu0 %1143
        %1145 = vrot.lane.b32.xlu0 %v1064, 88
        %v1146 = vpop.permute.xlu0 %1145
        %v1147 = vsel %vm513, %v1144, 0
        %v1149 = vsel %vm513, %v1146, 0
        %1151 = vmatpush.xpose.msra.mxu0 0.0
        %1152 = vmatpush.xpose.msra.mxu0 0.0
        %1153 = vmatpush.xpose.msra.mxu0 0.0
        %1154 = vmatpush.xpose.msra.mxu0 0.0
        %1155 = vmatpush.xpose.msra.mxu0 0.0
        %1156 = vmatpush.xpose.msra.mxu0 0.0
        %1157 = vmatpush.xpose.msra.mxu0 0.0
        %1158 = vmatpush.xpose.msra.mxu0 0.0
        %1159 = vmatpush.xpose.msra.mxu0 0.0
        %1160 = vmatpush.xpose.msra.mxu0 0.0
        %1161 = vmatpush.xpose.msra.mxu0 0.0
        %1162 = vmatpush.xpose.msra.mxu0 0.0
        %1163 = vmatpush.xpose.msra.mxu0 0.0
        %1164 = vmatpush.xpose.msra.mxu0 0.0
        %1165 = vmatpush.xpose.msra.mxu0 0.0
        %1166 = vmatpush.xpose.msra.mxu0 %v1149
        %1167 = vmatmul.f32.gmra.mxu0 %v1147
        %v1168 = vpop.f32.mrf.mxu0
        %v1169 = vadd.f32 0.0, %v1168
        %1170 = vdwg.mxu0
        %v1171 = vsel %vm513, %v1169, -inf
        %1172 = vmax.xlane.f32.xlu0 %v1171
        %v1173 = vpop.xlane.xlu0 %1172
        %v1174 = vsub.f32 %v1169, %v1173
        %v1175 = vmul.f32 %v1174, 1.442695
        %v1176 = vpow.pop %v1175
        %v1177 = vsel %vm513, %v1176, 0.0
        %1178 = vadd.xlane.f32.xlu0 %v1177
        %v1179 = vpop.xlane.xlu0 %1178
        %v1180 = vrcp.pop %v1179
        %v1181 = vmul.f32 %v1179, %v1180
        %v1182 = vsub.f32 1.0, %v1181
        %v1183 = vmul.f32 %v1180, %v1182
        %v1184 = vadd.f32 %v1180, %v1183
        %vm1185 = vweird.f32 %v1179
        %vm1186 = vweird.f32 %v1180
        %vm1187 = vmor %vm1185, %vm1186
        %v1188 = vsel %vm1187, %v1180, %v1184
        %v1189 = vand.u32 2147483647, %v1179
        %vm1190 = vcmp.eq.f32.partialorder %v1189, 8.507059e+37
        %v1191 = vand.u32 %v1179, 2147483648
        %v1192 = vor.u32 1.1754944e-38, %v1191
        %v1193 = vsel %vm1190, %v1192, %v1188
        %v1194 = vmul.f32 %v1176, %v1193
        %1195 = vrot.lane.b32.xlu0 %v1064, 56
        %v1196 = vpop.permute.xlu0 %1195
        %v1199 = vsel %vm513, %v1194, 0
        %1201 = vmatpush.msra.mxu0 0.0
        %1202 = vmatpush.msra.mxu0 0.0
        %1203 = vmatpush.msra.mxu0 0.0
        %1204 = vmatpush.msra.mxu0 0.0
        %1205 = vmatpush.msra.mxu0 0.0
        %1206 = vmatpush.msra.mxu0 0.0
        %1207 = vmatpush.msra.mxu0 0.0
        %1208 = vmatpush.msra.mxu0 0.0
        %1209 = vmatpush.msra.mxu0 0.0
        %1210 = vmatpush.msra.mxu0 0.0
        %1211 = vmatpush.msra.mxu0 0.0
        %1212 = vmatpush.msra.mxu0 0.0
        %1213 = vmatpush.msra.mxu0 0.0
        %1214 = vmatpush.msra.mxu0 0.0
        %1215 = vmatpush.msra.mxu0 0.0
        %1216 = vmatpush.msra.mxu0 %v1196
        %1217 = vmatmul.f32.gmra.mxu0 %v1199
        %v1218 = vpop.f32.mrf.mxu0
        %v1219 = vadd.f32 0.0, %v1218
        %1220 = vdwg.mxu0
        %1221 = vrot.lane.b32.xlu0 %v1064, 112
        %v1222 = vpop.permute.xlu0 %1221
        %1223 = vrot.lane.b32.xlu0 %v1064, 80
        %v1224 = vpop.permute.xlu0 %1223
        %v1225 = vsel %vm513, %v1222, 0
        %v1227 = vsel %vm513, %v1224, 0
        %1229 = vmatpush.xpose.msra.mxu0 0.0
        %1230 = vmatpush.xpose.msra.mxu0 0.0
        %1231 = vmatpush.xpose.msra.mxu0 0.0
        %1232 = vmatpush.xpose.msra.mxu0 0.0
        %1233 = vmatpush.xpose.msra.mxu0 0.0
        %1234 = vmatpush.xpose.msra.mxu0 0.0
        %1235 = vmatpush.xpose.msra.mxu0 0.0
        %1236 = vmatpush.xpose.msra.mxu0 0.0
        %1237 = vmatpush.xpose.msra.mxu0 0.0
        %1238 = vmatpush.xpose.msra.mxu0 0.0
        %1239 = vmatpush.xpose.msra.mxu0 0.0
        %1240 = vmatpush.xpose.msra.mxu0 0.0
        %1241 = vmatpush.xpose.msra.mxu0 0.0
        %1242 = vmatpush.xpose.msra.mxu0 0.0
        %1243 = vmatpush.xpose.msra.mxu0 0.0
        %1244 = vmatpush.xpose.msra.mxu0 %v1227
        %1245 = vmatmul.f32.gmra.mxu0 %v1225
        %v1246 = vpop.f32.mrf.mxu0
        %v1247 = vadd.f32 0.0, %v1246
        %1248 = vdwg.mxu0
        %v1249 = vsel %vm513, %v1247, -inf
        %1250 = vmax.xlane.f32.xlu0 %v1249
        %v1251 = vpop.xlane.xlu0 %1250
        %v1252 = vsub.f32 %v1247, %v1251
        %v1253 = vmul.f32 %v1252, 1.442695
        %v1254 = vpow.pop %v1253
        %v1255 = vsel %vm513, %v1254, 0.0
        %1256 = vadd.xlane.f32.xlu0 %v1255
        %v1257 = vpop.xlane.xlu0 %1256
        %v1258 = vrcp.pop %v1257
        %v1259 = vmul.f32 %v1257, %v1258
        %v1260 = vsub.f32 1.0, %v1259
        %v1261 = vmul.f32 %v1258, %v1260
        %v1262 = vadd.f32 %v1258, %v1261
        %vm1263 = vweird.f32 %v1257
        %vm1264 = vweird.f32 %v1258
        %vm1265 = vmor %vm1263, %vm1264
        %v1266 = vsel %vm1265, %v1258, %v1262
        %v1267 = vand.u32 2147483647, %v1257
        %vm1268 = vcmp.eq.f32.partialorder %v1267, 8.507059e+37
        %v1269 = vand.u32 %v1257, 2147483648
        %v1270 = vor.u32 1.1754944e-38, %v1269
        %v1271 = vsel %vm1268, %v1270, %v1266
        %v1272 = vmul.f32 %v1254, %v1271
        %1273 = vrot.lane.b32.xlu0 %v1064, 48
        %v1274 = vpop.permute.xlu0 %1273
        %v1277 = vsel %vm513, %v1272, 0
        %1279 = vmatpush.msra.mxu0 0.0
        %1280 = vmatpush.msra.mxu0 0.0
        %1281 = vmatpush.msra.mxu0 0.0
        %1282 = vmatpush.msra.mxu0 0.0
        %1283 = vmatpush.msra.mxu0 0.0
        %1284 = vmatpush.msra.mxu0 0.0
        %1285 = vmatpush.msra.mxu0 0.0
        %1286 = vmatpush.msra.mxu0 0.0
        %1287 = vmatpush.msra.mxu0 0.0
        %1288 = vmatpush.msra.mxu0 0.0
        %1289 = vmatpush.msra.mxu0 0.0
        %1290 = vmatpush.msra.mxu0 0.0
        %1291 = vmatpush.msra.mxu0 0.0
        %1292 = vmatpush.msra.mxu0 0.0
        %1293 = vmatpush.msra.mxu0 0.0
        %1294 = vmatpush.msra.mxu0 %v1274
        %1295 = vmatmul.f32.gmra.mxu0 %v1277
        %v1296 = vpop.f32.mrf.mxu0
        %v1297 = vadd.f32 0.0, %v1296
        %1298 = vdwg.mxu0
        %1299 = vrot.lane.b32.xlu0 %v1064, 104
        %v1300 = vpop.permute.xlu0 %1299
        %1301 = vrot.lane.b32.xlu0 %v1064, 72
        %v1302 = vpop.permute.xlu0 %1301
        %v1303 = vsel %vm513, %v1300, 0
        %v1305 = vsel %vm513, %v1302, 0
        %1307 = vmatpush.xpose.msra.mxu0 0.0
        %1308 = vmatpush.xpose.msra.mxu0 0.0
        %1309 = vmatpush.xpose.msra.mxu0 0.0
        %1310 = vmatpush.xpose.msra.mxu0 0.0
        %1311 = vmatpush.xpose.msra.mxu0 0.0
        %1312 = vmatpush.xpose.msra.mxu0 0.0
        %1313 = vmatpush.xpose.msra.mxu0 0.0
        %1314 = vmatpush.xpose.msra.mxu0 0.0
        %1315 = vmatpush.xpose.msra.mxu0 0.0
        %1316 = vmatpush.xpose.msra.mxu0 0.0
        %1317 = vmatpush.xpose.msra.mxu0 0.0
        %1318 = vmatpush.xpose.msra.mxu0 0.0
        %1319 = vmatpush.xpose.msra.mxu0 0.0
        %1320 = vmatpush.xpose.msra.mxu0 0.0
        %1321 = vmatpush.xpose.msra.mxu0 0.0
        %1322 = vmatpush.xpose.msra.mxu0 %v1305
        %1323 = vmatmul.f32.gmra.mxu0 %v1303
        %v1324 = vpop.f32.mrf.mxu0
        %v1325 = vadd.f32 0.0, %v1324
        %1326 = vdwg.mxu0
        %v1327 = vsel %vm513, %v1325, -inf
        %1328 = vmax.xlane.f32.xlu0 %v1327
        %v1329 = vpop.xlane.xlu0 %1328
        %v1330 = vsub.f32 %v1325, %v1329
        %v1331 = vmul.f32 %v1330, 1.442695
        %v1332 = vpow.pop %v1331
        %v1333 = vsel %vm513, %v1332, 0.0
        %1334 = vadd.xlane.f32.xlu0 %v1333
        %v1335 = vpop.xlane.xlu0 %1334
        %v1336 = vrcp.pop %v1335
        %v1337 = vmul.f32 %v1335, %v1336
        %v1338 = vsub.f32 1.0, %v1337
        %v1339 = vmul.f32 %v1336, %v1338
        %v1340 = vadd.f32 %v1336, %v1339
        %vm1341 = vweird.f32 %v1335
        %vm1342 = vweird.f32 %v1336
        %vm1343 = vmor %vm1341, %vm1342
        %v1344 = vsel %vm1343, %v1336, %v1340
        %v1345 = vand.u32 2147483647, %v1335
        %vm1346 = vcmp.eq.f32.partialorder %v1345, 8.507059e+37
        %v1347 = vand.u32 %v1335, 2147483648
        %v1348 = vor.u32 1.1754944e-38, %v1347
        %v1349 = vsel %vm1346, %v1348, %v1344
        %v1350 = vmul.f32 %v1332, %v1349
        %1351 = vrot.lane.b32.xlu0 %v1064, 40
        %v1352 = vpop.permute.xlu0 %1351
        %v1355 = vsel %vm513, %v1350, 0
        %1357 = vmatpush.msra.mxu0 0.0
        %1358 = vmatpush.msra.mxu0 0.0
        %1359 = vmatpush.msra.mxu0 0.0
        %1360 = vmatpush.msra.mxu0 0.0
        %1361 = vmatpush.msra.mxu0 0.0
        %1362 = vmatpush.msra.mxu0 0.0
        %1363 = vmatpush.msra.mxu0 0.0
        %1364 = vmatpush.msra.mxu0 0.0
        %1365 = vmatpush.msra.mxu0 0.0
        %1366 = vmatpush.msra.mxu0 0.0
        %1367 = vmatpush.msra.mxu0 0.0
        %1368 = vmatpush.msra.mxu0 0.0
        %1369 = vmatpush.msra.mxu0 0.0
        %1370 = vmatpush.msra.mxu0 0.0
        %1371 = vmatpush.msra.mxu0 0.0
        %1372 = vmatpush.msra.mxu0 %v1352
        %1373 = vmatmul.f32.gmra.mxu0 %v1355
        %v1374 = vpop.f32.mrf.mxu0
        %v1375 = vadd.f32 0.0, %v1374
        %1376 = vdwg.mxu0
        %1378 = vrot.lane.b32.xlu0 %v1219, 8
        %v1379 = vpop.permute.xlu0 %1378
        %1382 = vrot.lane.b32.xlu0 %v1297, 16
        %v1383 = vpop.permute.xlu0 %1382
        %1386 = vrot.lane.b32.xlu0 %v1375, 24
        %v1387 = vpop.permute.xlu0 %1386
        %v1389 = vsel %vm513, %v1141, %v1379
        %v1390 = vsel %vm835, %v1389, %v1383
        %v1391 = vsel %vm837, %v1390, %v1387
        %v1393 = vsel %vm441, %v1391, 0
        %1395 = vmatpush.msra.mxu0 0.0
        %1396 = vmatpush.msra.mxu0 0.0
        %1397 = vmatpush.msra.mxu0 0.0
        %1398 = vmatpush.msra.mxu0 0.0
        %1399 = vmatpush.msra.mxu0 0.0
        %1400 = vmatpush.msra.mxu0 0.0
        %1401 = vmatpush.msra.mxu0 0.0
        %1402 = vmatpush.msra.mxu0 0.0
        %1403 = vmatpush.msra.mxu0 0.0
        %1404 = vmatpush.msra.mxu0 0.0
        %1405 = vmatpush.msra.mxu0 0.0
        %1406 = vmatpush.msra.mxu0 0.0
        %1407 = vmatpush.msra.mxu0 %v842
        %1408 = vmatpush.msra.mxu0 %v841
        %1409 = vmatpush.msra.mxu0 %v840
        %1410 = vmatpush.msra.mxu0 %v839
        %1411 = vmatmul.f32.gmra.mxu0 %v1393
        %v1412 = vpop.f32.mrf.mxu0
        %v1413 = vadd.f32 0.0, %v1412
        %1414 = vdwg.mxu0
        %v1415 = vadd.f32 %v1018, %v1413
        %v1416 = vadd.f32 %v1415, %v869
        %v1417 = vsel %vm441, %v1416, 0.0
        %1418 = vadd.xlane.f32.xlu0 %v1417
        %v1419 = vpop.xlane.xlu0 %1418
        %v1420 = vmul.f32 %v1419, %v451
        %v1421 = vsub.f32 %v1416, %v1420
        %v1422 = vmul.f32 %v1421, %v1421
        %v1423 = vsel %vm441, %v1422, 0.0
        %1424 = vadd.xlane.f32.xlu0 %v1423
        %v1425 = vpop.xlane.xlu0 %1424
        %v1426 = vmul.f32 %v1425, %v451
        %v1427 = vadd.f32 %v1426, 1e-05
        %v1428 = vrsqrt.pop %v1427
        %v1429 = vmul.f32 %v1428, %v1427
        %v1430 = vmul.f32 %v1429, %v1428
        %v1431 = vmul.f32 0.5, %v1430
        %v1432 = vsub.f32 1.5, %v1431
        %v1433 = vmul.f32 %v1428, %v1432
        %vm1434 = vweird.f32 %v1427
        %vm1435 = vweird.f32 %v1428
        %vm1436 = vmor %vm1434, %vm1435
        %v1437 = vsel %vm1436, %v1428, %v1433
        %v1438 = vmul.f32 %v1421, %v1437
        %v1439 = vmul.f32 %v1438, %v895
        %v1440 = vadd.f32 %v1439, %v899
        %v1442 = vsel %vm441, %v1440, 0
        %1444 = vmatpush.msra.mxu0 0.0
        %1445 = vmatpush.msra.mxu0 0.0
        %1446 = vmatpush.msra.mxu0 0.0
        %1447 = vmatpush.msra.mxu0 0.0
        %1448 = vmatpush.msra.mxu0 0.0
        %1449 = vmatpush.msra.mxu0 0.0
        %1450 = vmatpush.msra.mxu0 0.0
        %1451 = vmatpush.msra.mxu0 0.0
        %1452 = vmatpush.msra.mxu0 0.0
        %1453 = vmatpush.msra.mxu0 0.0
        %1454 = vmatpush.msra.mxu0 0.0
        %1455 = vmatpush.msra.mxu0 0.0
        %1456 = vmatpush.msra.mxu0 %v905
        %1457 = vmatpush.msra.mxu0 %v904
        %1458 = vmatpush.msra.mxu0 %v903
        %1459 = vmatpush.msra.mxu0 %v902
        %1460 = vmatmul.f32.gmra.mxu0 %v1442
        %v1461 = vpop.f32.mrf.mxu0
        %v1462 = vadd.f32 %v908, %v1461
        %1463 = vdwg.mxu0
        %v1464 = vmul.f32 %v1462, 0.5
        %v1465 = vmul.f32 %v1462, 0.70710677
        %v1466 = vmul.f32 %v1465, %v1465
        %v1467 = vmin.f32 16.0, %v1466
        %v1468 = vmul.f32 %v1467, 2.1237322e-06
        %v1469 = vadd.f32 %v1468, 0.00028619796
        %v1470 = vmul.f32 %v1467, %v1469
        %v1471 = vadd.f32 %v1470, 0.0036580483
        %v1472 = vmul.f32 %v1467, %v1471
        %v1473 = vadd.f32 %v1472, 0.05243302
        %v1474 = vmul.f32 %v1467, %v1473
        %v1475 = vadd.f32 %v1474, 0.18741608
        %v1476 = vmul.f32 %v1467, %v1475
        %v1477 = vadd.f32 %v1476, 1.1283791
        %v1478 = vmul.f32 %v1465, %v1477
        %v1479 = vmul.f32 %v1467, 3.8918573e-05
        %v1480 = vadd.f32 %v1479, 0.001143296
        %v1481 = vmul.f32 %v1467, %v1480
        %v1482 = vadd.f32 %v1481, 0.014752088
        %v1483 = vmul.f32 %v1467, %v1482
        %v1484 = vadd.f32 %v1483, 0.112945676
        %v1485 = vmul.f32 %v1467, %v1484
        %v1486 = vadd.f32 %v1485, 0.4994258
        %v1487 = vmul.f32 %v1467, %v1486
        %v1488 = vadd.f32 %v1487, 1.0
        %v1489 = vrcp.pop %v1488
        %v1490 = vmul.f32 %v1488, %v1489
        %v1491 = vsub.f32 1.0, %v1490
        %v1492 = vmul.f32 %v1489, %v1491
        %v1493 = vadd.f32 %v1489, %v1492
        %vm1494 = vweird.f32 %v1488
        %vm1495 = vweird.f32 %v1489
        %vm1496 = vmor %vm1494, %vm1495
        %v1497 = vsel %vm1496, %v1489, %v1493
        %v1498 = vand.u32 2147483647, %v1488
        %vm1499 = vcmp.eq.f32.partialorder %v1498, 8.507059e+37
        %v1500 = vand.u32 %v1488, 2147483648
        %v1501 = vor.u32 1.1754944e-38, %v1500
        %v1502 = vsel %vm1499, %v1501, %v1497
        %v1503 = vmul.f32 %v1478, %v1502
        %v1504 = vmin.f32 %v1503, 1.0
        %v1505 = vmax.f32 %v1504, -1.0
        %v1506 = vadd.f32 %v1505, 1.0
        %v1507 = vmul.f32 %v1464, %v1506
        %1508 = vmatpush.msra.mxu0 %v992
        %1509 = vmatpush.msra.mxu0 %v991
        %1510 = vmatpush.msra.mxu0 %v990
        %1511 = vmatpush.msra.mxu0 %v989
        %1512 = vmatpush.msra.mxu0 %v988
        %1513 = vmatpush.msra.mxu0 %v987
        %1514 = vmatpush.msra.mxu0 %v986
        %1515 = vmatpush.msra.mxu0 %v985
        %1516 = vmatpush.msra.mxu0 %v984
        %1517 = vmatpush.msra.mxu0 %v983
        %1518 = vmatpush.msra.mxu0 %v982
        %1519 = vmatpush.msra.mxu0 %v981
        %1520 = vmatpush.msra.mxu0 %v980
        %1521 = vmatpush.msra.mxu0 %v979
        %1522 = vmatpush.msra.mxu0 %v978
        %1523 = vmatpush.msra.mxu0 %v977
        %1524 = vmatmul.f32.gmra.mxu0 %v1507
        %v1525 = vpop.f32.mrf.mxu0
        %v1526 = vadd.f32 0.0, %v1525
        %1527 = vdwg.mxu0
        %v1528 = vadd.f32 %v1416, %v1526
        %v1529 = vadd.f32 %v1528, %v1016
        %1530 = vst.msk [vmem:[%s431] sm:$0xff] %vm441, %v1529
        %s1531 = sand.u32 %s313, 1
        %s1532 = scalar_lea.sflag [#allocation3], %s1531
        %s1533 = sand.u32 %s313, 1
        %s1534 = smul.addr %s1533, 8
        %s1535 = scalar_lea.vmem [#allocation2], %s1534
        // Predicated region
        $region73: #{tiny_vit_block.1} parent=71 // pred_check
          %p1536 = pneg %p323
        $region74: #{tiny_vit_block.1} parent=71 // pred_check_branch
          %1538 = sbr.rel (%p1536) target = $region76
        $region75: #{tiny_vit_block.1} parent=71 // pred_region
          %1540 = vsyncadd %s1532, 0
          %s1541 = smul.addr %s27, 8
          %s1542 = scalar_lea.hbm %s13, %s1541
          %s1544 = sshll.u32 %s1535, 4
          %s1545 = int_to_ptr.vmem [resolvable:$true] %s1544
          %s1546 = sshll.u32 %s1542, 4
          %s1547 = int_to_ptr.hbm [resolvable:$true] %s1546
          %1549 = dma.vmem_to_hbm [thread:$0]  %s1545, 128, %s1547, %s1532
        $region76: #{tiny_vit_block.1} parent=71 // pred_fallthru
          _
      $region72: #{tiny_vit_block.1} parent=5 // pred_fallthru
        _
      %p1550 = scmp.le.s32.totalorder 2, %s22
      // Predicated region
      $region77: #{tiny_vit_block.1} parent=5 // pred_check
        %p1551 = pneg %p1550
      $region78: #{tiny_vit_block.1} parent=5 // pred_check_branch
        %1553 = sbr.rel (%p1551) target = $region80
      $region79: #{tiny_vit_block.1} parent=5 // pred_region
        %s1554 = ssub.s32 %s22, 2
        // Predicated region
        $region81: #{tiny_vit_block.1} parent=79 // pred_check
          %p1555 = pneg %p329
        $region82: #{tiny_vit_block.1} parent=79 // pred_check_branch
          %1557 = sbr.rel (%p1555) target = $region84
        $region83: #{tiny_vit_block.1} parent=79 // pred_region
          %s1558 = sand.u32 %s314, 1
          %s1559 = scalar_lea.sflag [#allocation3], %s1558
          %s1560 = sand.u32 %s314, 1
          %s1561 = smul.addr %s1560, 8
          %s1562 = scalar_lea.vmem [#allocation2], %s1561
          %1564 = dma.done %s1559, 128
        $region84: #{tiny_vit_block.1} parent=79 // pred_fallthru
          _
      $region80: #{tiny_vit_block.1} parent=5 // pred_fallthru
        _
    $region6: #{tiny_vit_block.1} parent=1 // loop_footer
      %s26 = sadd.s32 1, %s22
    $region7: #{tiny_vit_block.1} parent=1 // loop_footer_branch
      %21 = sbr.rel target = $region3
    $region8: #{tiny_vit_block.1} parent=1 // loop_exit
      _
    %1565 = vsyncpa [#allocation3], 1
    %s1566 = scalar_lea.sflag [#allocation3], 1
    %1567 = vsyncpa %s1566, 1

</llo_original>
